<compile_context>
chip_gen: v5e
topology: v5e:2x2
jax: 0.10.0
libtpu: 0.0.40
codegen_flags: <defaults>
</compile_context>

<pallas_src>
import jax
import jax.numpy as jnp
from jax import lax
from jax.experimental import pallas as pl
from jax.experimental.pallas import tpu as pltpu


def _make_bilstm_kernel(num_layers, T, B, E, H):
    G = 4 * H  # per-direction gate width (i, f, g, o)

    def kernel(*refs):
        it = iter(refs)
        x_ref = next(it)                                       # (T*B, E) bf16
        layers = [(next(it), next(it), next(it)) for _ in range(num_layers)]
        outf_ref, outb_ref, hnf_ref, hnb_ref = next(it), next(it), next(it), next(it)
        gx_sc = next(it)                                       # (T*B, 8H) f32 scratch

        lhs = x_ref[...]                                       # bf16 (T*B, Din)
        for L, (wx_ref, whh_ref, b_ref) in enumerate(layers):
            # ---- Hoisted input projection: all timesteps, both directions, ONE matmul.
            gx_sc[...] = (jnp.dot(lhs, wx_ref[...],
                                  preferred_element_type=jnp.float32)
                          + b_ref[...])                        # (T*B, 8H) f32

            whh = whh_ref[...]                                 # bf16 (2H, 8H), block-diag
            h_lanes = None                                     # (B, 2H) f32: [h_f | h_b]
            c_rows = None                                      # (2B, H) f32: [c_f ; c_b]
            hs_f = [None] * T
            hs_b = [None] * T

            # ---- Serial recurrence, fully unrolled (T is small & static).
            for s in range(T):
                rf0 = s * B                                    # fwd consumes time s
                rb0 = (T - 1 - s) * B                          # bwd consumes time T-1-s
                g_f = gx_sc[rf0:rf0 + B, 0:G]                  # (B, 4H), off serial chain
                g_b = gx_sc[rb0:rb0 + B, G:2 * G]              # (B, 4H)
                if s > 0:
                    # One block-diagonal matmul for both directions.
                    rec = jnp.dot(h_lanes.astype(jnp.bfloat16), whh,
                                  preferred_element_type=jnp.float32)   # (B, 8H)
                    g_f = g_f + rec[:, 0:G]
                    g_b = g_b + rec[:, G:2 * G]

                # Shared nonlinearity for both directions on one (2B, 4H) tile.
                gates = jnp.concatenate([g_f, g_b], axis=0)    # (2B, 4H)
                sig = jax.nn.sigmoid(gates)                    # full-tile EUP pass
                th = jnp.tanh(gates)                           # full-tile EUP pass
                i_g = sig[:, 0 * H:1 * H]
                f_g = sig[:, 1 * H:2 * H]
                g_g = th[:, 2 * H:3 * H]
                o_g = sig[:, 3 * H:4 * H]
                c_rows = i_g * g_g if s == 0 else f_g * c_rows + i_g * g_g
                h_rows = o_g * jnp.tanh(c_rows)                # (2B, H)

                h_f = h_rows[0:B, :]
                h_b = h_rows[B:2 * B, :]
                h_lanes = jnp.concatenate([h_f, h_b], axis=1)  # (B, 2H) for next matmul
                hs_f[s] = h_f                                  # fwd output at time s
                hs_b[T - 1 - s] = h_b                          # bwd output at time T-1-s

            out_f = jnp.concatenate(hs_f, axis=0)              # (T*B, H), time-ordered
            out_b = jnp.concatenate(hs_b, axis=0)              # (T*B, H), time-ordered
            if L == num_layers - 1:
                outf_ref[...] = out_f                          # single bulk store
                outb_ref[...] = out_b                          # single bulk store
                hnf_ref[...] = h_f                             # fwd state after time T-1
                hnb_ref[...] = h_b                             # bwd state after time 0
            else:
                # Next layer's input slab: [fwd | bwd] features, bf16 MXU operand.
                lhs = jnp.concatenate([out_f, out_b], axis=1).astype(jnp.bfloat16)

    return kernel


def init_bilstm_params(key, embed_dim, out_dim, num_layers=2):
    """Raw params with nn.LSTM shapes & init (uniform(-k, k), k = 1/sqrt(H))."""
    k = 1.0 / jnp.sqrt(jnp.asarray(out_dim, jnp.float32))
    params = {}
    for layer in range(num_layers):
        in_size = embed_dim if layer == 0 else 2 * out_dim
        for direction in range(2):  # 0 = forward, 1 = backward
            key, k1, k2, k3, k4 = jax.random.split(key, 5)
            w_ih = jax.random.uniform(k1, (4 * out_dim, in_size), jnp.float32, -k, k)
            w_hh = jax.random.uniform(k2, (4 * out_dim, out_dim), jnp.float32, -k, k)
            b_ih = jax.random.uniform(k3, (4 * out_dim,), jnp.float32, -k, k)
            b_hh = jax.random.uniform(k4, (4 * out_dim,), jnp.float32, -k, k)
            params[(layer, direction)] = (w_ih, w_hh, b_ih, b_hh)
    return params


def pack_bilstm_params(raw_params, num_layers, out_dim):
    """One-time weight prep: transposes, direction-concat of input weights,
    block-diagonal recurrent weights, summed biases; bf16 MXU operands."""
    H = out_dim
    packed = []
    for L in range(num_layers):
        w_ih_f, w_hh_f, b_ih_f, b_hh_f = raw_params[(L, 0)]
        w_ih_b, w_hh_b, b_ih_b, b_hh_b = raw_params[(L, 1)]
        # Input projection: (Din, 8H) = [fwd 4H gates | bwd 4H gates].
        wx = jnp.concatenate([jnp.transpose(w_ih_f), jnp.transpose(w_ih_b)],
                             axis=1).astype(jnp.bfloat16)
        # Recurrent block-diagonal: rows 0:H (h_f) -> cols 0:4H, rows H:2H (h_b) -> 4H:8H.
        whh = jnp.zeros((2 * H, 8 * H), jnp.float32)
        whh = whh.at[0:H, 0:4 * H].set(jnp.transpose(w_hh_f))
        whh = whh.at[H:2 * H, 4 * H:8 * H].set(jnp.transpose(w_hh_b))
        whh = whh.astype(jnp.bfloat16)
        # Bias (b_ih + b_hh), added once to the hoisted projection, kept in f32.
        b = jnp.concatenate([b_ih_f + b_hh_f,
                             b_ih_b + b_hh_b])[None, :].astype(jnp.float32)   # (1, 8H)
        packed.append({"wx": wx, "whh": whh, "b": b})
    return packed


@jax.jit
def bilstm_forward(x, packed):
    """Matches BiLSTMNet.forward: returns (f_out, b_out, fh_n, bh_n)."""
    T, B, E = x.shape
    num_layers = len(packed)
    H = packed[0]["whh"].shape[0] // 2

    flat_in = [x.astype(jnp.bfloat16).reshape(T * B, E)]
    for p in packed:
        flat_in += [p["wx"], p["whh"], p["b"]]

    vmem = pl.BlockSpec(memory_space=pltpu.MemorySpace.VMEM)
    outf, outb, fh_n, bh_n = pl.pallas_call(
        _make_bilstm_kernel(num_layers, T, B, E, H),
        out_shape=(
            jax.ShapeDtypeStruct((T * B, H), jnp.float32),
            jax.ShapeDtypeStruct((T * B, H), jnp.float32),
            jax.ShapeDtypeStruct((B, H), jnp.float32),
            jax.ShapeDtypeStruct((B, H), jnp.float32),
        ),
        in_specs=[vmem] * len(flat_in),
        out_specs=(vmem, vmem, vmem, vmem),
        scratch_shapes=[
            pltpu.VMEM((T * B, 8 * H), jnp.float32),   # hoisted gates_x (reused per layer)
        ],
    )(*flat_in)

    return outf.reshape(T, B, H), outb.reshape(T, B, H), fh_n, bh_n


# ---------------- pure-JAX reference (correctness check only) ----------------

def _lstm_ref_direction(x, w_ih, w_hh, b_ih, b_hh, reverse):
    T, B, _ = x.shape
    H = w_hh.shape[1]
    xs = x[::-1] if reverse else x

    def step(carry, x_t):
        h, c = carry
        gates = x_t @ w_ih.T + h @ w_hh.T + b_ih + b_hh
        i, f, g, o = jnp.split(gates, 4, axis=-1)
        c = jax.nn.sigmoid(f) * c + jax.nn.sigmoid(i) * jnp.tanh(g)
        h = jax.nn.sigmoid(o) * jnp.tanh(c)
        return (h, c), h

    h0 = jnp.zeros((B, H), jnp.float32)
    (h_n, _), ys = lax.scan(step, (h0, h0), xs)
    if reverse:
        ys = ys[::-1]
    return ys, h_n


def bilstm_reference(x, raw_params, num_layers):
    inp = x
    f_out = b_out = fh_n = bh_n = None
    for L in range(num_layers):
        f_out, fh_n = _lstm_ref_direction(inp, *raw_params[(L, 0)], reverse=False)
        b_out, bh_n = _lstm_ref_direction(inp, *raw_params[(L, 1)], reverse=True)
        inp = jnp.concatenate([f_out, b_out], axis=-1)
    return f_out, b_out, fh_n, bh_n


if __name__ == "__main__":
    seq_len, batch, embed_dim, out_dim, num_layers = 8, 2, 16, 32, 2

    key = jax.random.PRNGKey(0)
    key_x, key_p = jax.random.split(key)
    x = jax.random.normal(key_x, (seq_len, batch, embed_dim), jnp.float32)

    raw_params = init_bilstm_params(key_p, embed_dim, out_dim, num_layers)
    packed = pack_bilstm_params(raw_params, num_layers, out_dim)

    f_out, b_out, fh_n, bh_n = bilstm_forward(x, packed)
    jax.block_until_ready((f_out, b_out, fh_n, bh_n))

    assert f_out.shape == (seq_len, batch, out_dim)
    assert b_out.shape == (seq_len, batch, out_dim)
    assert fh_n.shape == (batch, out_dim)
    assert bh_n.shape == (batch, out_dim)

    # Correctness check vs. a pure-f32 lax.scan reference.  The kernel uses bf16
    # MXU operands (f32 accumulation / f32 cell math), so allow 4e-2; real bugs
    # (gate order, time indexing) produce errors O(0.1-1.0).
    rf, rb, rfh, rbh = bilstm_reference(x, raw_params, num_layers)
    for got, want in ((f_out, rf), (b_out, rb), (fh_n, rfh), (bh_n, rbh)):
        err = float(jnp.max(jnp.abs(got - want)))
        assert err < 4e-2, f"max abs err {err}"

    print("KERNEL_OK")
</pallas_src>

<mosaic_0001>
module attributes {stable_mosaic.version = 11 : i64} {
  func.func @kernel(%arg0: memref<16x16xbf16, #tpu.memory_space<vmem>>, %arg1: memref<16x256xbf16, #tpu.memory_space<vmem>>, %arg2: memref<64x256xbf16, #tpu.memory_space<vmem>>, %arg3: memref<1x256xf32, #tpu.memory_space<vmem>>, %arg4: memref<64x256xbf16, #tpu.memory_space<vmem>>, %arg5: memref<64x256xbf16, #tpu.memory_space<vmem>>, %arg6: memref<1x256xf32, #tpu.memory_space<vmem>>, %arg7: memref<16x32xf32, #tpu.memory_space<vmem>>, %arg8: memref<16x32xf32, #tpu.memory_space<vmem>>, %arg9: memref<2x32xf32, #tpu.memory_space<vmem>>, %arg10: memref<2x32xf32, #tpu.memory_space<vmem>>, %arg11: memref<16x256xf32, #tpu.memory_space<vmem>>) attributes {dimension_semantics = [], scalar_prefetch = 0 : i64, scratch_operands = 1 : i64, tpu.core_type = #tpu.core_type<tc>} {
    %c0 = arith.constant 0 : index
    %c0_0 = arith.constant 0 : index
    %0 = vector.load %arg0[%c0, %c0_0] : memref<16x16xbf16, #tpu.memory_space<vmem>>, vector<16x16xbf16>
    %c0_1 = arith.constant 0 : index
    %c0_2 = arith.constant 0 : index
    %1 = vector.load %arg1[%c0_1, %c0_2] : memref<16x256xbf16, #tpu.memory_space<vmem>>, vector<16x256xbf16>
    %cst = arith.constant dense<0.000000e+00> : vector<16x256xf32>
    %2 = tpu.matmul %0, %1, %cst {dimension_numbers = #tpu.dot_dimension_numbers<[1], [0], [0], [1], [0, 0, 1, 1], [], []>} : vector<16x16xbf16>, vector<16x256xbf16>, vector<16x256xf32> -> vector<16x256xf32>
    %c0_3 = arith.constant 0 : index
    %c0_4 = arith.constant 0 : index
    %3 = vector.load %arg3[%c0_3, %c0_4] : memref<1x256xf32, #tpu.memory_space<vmem>>, vector<1x256xf32>
    %4 = vector.broadcast %3 : vector<1x256xf32> to vector<16x256xf32>
    %5 = arith.addf %2, %4 : vector<16x256xf32>
    %c0_5 = arith.constant 0 : index
    %c0_6 = arith.constant 0 : index
    %6 = vector.load %arg11[%c0_5, %c0_6] : memref<16x256xf32, #tpu.memory_space<vmem>>, vector<16x256xf32>
    tpu.vector_store %arg11[%c0_5, %c0_6], %5 {strides = array<i32>} : memref<16x256xf32, #tpu.memory_space<vmem>>, vector<16x256xf32>,
    %c0_7 = arith.constant 0 : index
    %c0_8 = arith.constant 0 : index
    %7 = vector.load %arg2[%c0_7, %c0_8] : memref<64x256xbf16, #tpu.memory_space<vmem>>, vector<64x256xbf16>
    %c0_9 = arith.constant 0 : index
    %c0_10 = arith.constant 0 : index
    %8 = vector.load %arg11[%c0_9, %c0_10] : memref<16x256xf32, #tpu.memory_space<vmem>>, vector<2x128xf32>
    %c14 = arith.constant 14 : index
    %c128 = arith.constant 128 : index
    %9 = vector.load %arg11[%c14, %c128] : memref<16x256xf32, #tpu.memory_space<vmem>>, vector<2x128xf32>
    %10 = tpu.concatenate %8, %9 in 0 : vector<2x128xf32>, vector<2x128xf32> -> vector<4x128xf32>
    %11 = arith.negf %10 : vector<4x128xf32>
    %12 = math.exp %11 : vector<4x128xf32>
    %cst_11 = arith.constant 1.000000e+00 : f32
    %13 = vector.broadcast %cst_11 : f32 to vector<4x128xf32>
    %14 = arith.addf %13, %12 : vector<4x128xf32>
    %15 = arith.divf %13, %14 : vector<4x128xf32>
    %16 = math.tanh %10 : vector<4x128xf32>
    %17 = vector.extract_strided_slice %15 {offsets = [0, 0], sizes = [4, 32], strides = [1, 1]} : vector<4x128xf32> to vector<4x32xf32>
    %18 = vector.extract_strided_slice %16 {offsets = [0, 64], sizes = [4, 32], strides = [1, 1]} : vector<4x128xf32> to vector<4x32xf32>
    %19 = vector.extract_strided_slice %15 {offsets = [0, 96], sizes = [4, 32], strides = [1, 1]} : vector<4x128xf32> to vector<4x32xf32>
    %20 = arith.mulf %17, %18 : vector<4x32xf32>
    %21 = math.tanh %20 : vector<4x32xf32>
    %22 = arith.mulf %19, %21 : vector<4x32xf32>
    %23 = vector.extract_strided_slice %22 {offsets = [0, 0], sizes = [2, 32], strides = [1, 1]} : vector<4x32xf32> to vector<2x32xf32>
    %24 = vector.extract_strided_slice %22 {offsets = [2, 0], sizes = [2, 32], strides = [1, 1]} : vector<4x32xf32> to vector<2x32xf32>
    %25 = tpu.concatenate %23, %24 in 1 : vector<2x32xf32>, vector<2x32xf32> -> vector<2x64xf32>
    %c2 = arith.constant 2 : index
    %c0_12 = arith.constant 0 : index
    %26 = vector.load %arg11[%c2, %c0_12] : memref<16x256xf32, #tpu.memory_space<vmem>>, vector<2x128xf32>
    %c12 = arith.constant 12 : index
    %c128_13 = arith.constant 128 : index
    %27 = vector.load %arg11[%c12, %c128_13] : memref<16x256xf32, #tpu.memory_space<vmem>>, vector<2x128xf32>
    %28 = arith.truncf %25 : vector<2x64xf32> to vector<2x64xbf16>
    %cst_14 = arith.constant dense<0.000000e+00> : vector<2x256xf32>
    %29 = tpu.matmul %28, %7, %cst_14 {dimension_numbers = #tpu.dot_dimension_numbers<[1], [0], [0], [1], [0, 0, 1, 1], [], []>} : vector<2x64xbf16>, vector<64x256xbf16>, vector<2x256xf32> -> vector<2x256xf32>
    %30 = vector.extract_strided_slice %29 {offsets = [0, 0], sizes = [2, 128], strides = [1, 1]} : vector<2x256xf32> to vector<2x128xf32>
    %31 = arith.addf %26, %30 : vector<2x128xf32>
    %32 = vector.extract_strided_slice %29 {offsets = [0, 128], sizes = [2, 128], strides = [1, 1]} : vector<2x256xf32> to vector<2x128xf32>
    %33 = arith.addf %27, %32 : vector<2x128xf32>
    %34 = tpu.concatenate %31, %33 in 0 : vector<2x128xf32>, vector<2x128xf32> -> vector<4x128xf32>
    %35 = arith.negf %34 : vector<4x128xf32>
    %36 = math.exp %35 : vector<4x128xf32>
    %cst_15 = arith.constant 1.000000e+00 : f32
    %37 = vector.broadcast %cst_15 : f32 to vector<4x128xf32>
    %38 = arith.addf %37, %36 : vector<4x128xf32>
    %39 = arith.divf %37, %38 : vector<4x128xf32>
    %40 = math.tanh %34 : vector<4x128xf32>
    %41 = vector.extract_strided_slice %39 {offsets = [0, 0], sizes = [4, 32], strides = [1, 1]} : vector<4x128xf32> to vector<4x32xf32>
    %42 = vector.extract_strided_slice %39 {offsets = [0, 32], sizes = [4, 32], strides = [1, 1]} : vector<4x128xf32> to vector<4x32xf32>
    %43 = vector.extract_strided_slice %40 {offsets = [0, 64], sizes = [4, 32], strides = [1, 1]} : vector<4x128xf32> to vector<4x32xf32>
    %44 = vector.extract_strided_slice %39 {offsets = [0, 96], sizes = [4, 32], strides = [1, 1]} : vector<4x128xf32> to vector<4x32xf32>
    %45 = arith.mulf %42, %20 : vector<4x32xf32>
    %46 = arith.mulf %41, %43 : vector<4x32xf32>
    %47 = arith.addf %45, %46 : vector<4x32xf32>
    %48 = math.tanh %47 : vector<4x32xf32>
    %49 = arith.mulf %44, %48 : vector<4x32xf32>
    %50 = vector.extract_strided_slice %49 {offsets = [0, 0], sizes = [2, 32], strides = [1, 1]} : vector<4x32xf32> to vector<2x32xf32>
    %51 = vector.extract_strided_slice %49 {offsets = [2, 0], sizes = [2, 32], strides = [1, 1]} : vector<4x32xf32> to vector<2x32xf32>
    %52 = tpu.concatenate %50, %51 in 1 : vector<2x32xf32>, vector<2x32xf32> -> vector<2x64xf32>
    %c4 = arith.constant 4 : index
    %c0_16 = arith.constant 0 : index
    %53 = vector.load %arg11[%c4, %c0_16] : memref<16x256xf32, #tpu.memory_space<vmem>>, vector<2x128xf32>
    %c10 = arith.constant 10 : index
    %c128_17 = arith.constant 128 : index
    %54 = vector.load %arg11[%c10, %c128_17] : memref<16x256xf32, #tpu.memory_space<vmem>>, vector<2x128xf32>
    %55 = arith.truncf %52 : vector<2x64xf32> to vector<2x64xbf16>
    %cst_18 = arith.constant dense<0.000000e+00> : vector<2x256xf32>
    %56 = tpu.matmul %55, %7, %cst_18 {dimension_numbers = #tpu.dot_dimension_numbers<[1], [0], [0], [1], [0, 0, 1, 1], [], []>} : vector<2x64xbf16>, vector<64x256xbf16>, vector<2x256xf32> -> vector<2x256xf32>
    %57 = vector.extract_strided_slice %56 {offsets = [0, 0], sizes = [2, 128], strides = [1, 1]} : vector<2x256xf32> to vector<2x128xf32>
    %58 = arith.addf %53, %57 : vector<2x128xf32>
    %59 = vector.extract_strided_slice %56 {offsets = [0, 128], sizes = [2, 128], strides = [1, 1]} : vector<2x256xf32> to vector<2x128xf32>
    %60 = arith.addf %54, %59 : vector<2x128xf32>
    %61 = tpu.concatenate %58, %60 in 0 : vector<2x128xf32>, vector<2x128xf32> -> vector<4x128xf32>
    %62 = arith.negf %61 : vector<4x128xf32>
    %63 = math.exp %62 : vector<4x128xf32>
    %cst_19 = arith.constant 1.000000e+00 : f32
    %64 = vector.broadcast %cst_19 : f32 to vector<4x128xf32>
    %65 = arith.addf %64, %63 : vector<4x128xf32>
    %66 = arith.divf %64, %65 : vector<4x128xf32>
    %67 = math.tanh %61 : vector<4x128xf32>
    %68 = vector.extract_strided_slice %66 {offsets = [0, 0], sizes = [4, 32], strides = [1, 1]} : vector<4x128xf32> to vector<4x32xf32>
    %69 = vector.extract_strided_slice %66 {offsets = [0, 32], sizes = [4, 32], strides = [1, 1]} : vector<4x128xf32> to vector<4x32xf32>
    %70 = vector.extract_strided_slice %67 {offsets = [0, 64], sizes = [4, 32], strides = [1, 1]} : vector<4x128xf32> to vector<4x32xf32>
    %71 = vector.extract_strided_slice %66 {offsets = [0, 96], sizes = [4, 32], strides = [1, 1]} : vector<4x128xf32> to vector<4x32xf32>
    %72 = arith.mulf %69, %47 : vector<4x32xf32>
    %73 = arith.mulf %68, %70 : vector<4x32xf32>
    %74 = arith.addf %72, %73 : vector<4x32xf32>
    %75 = math.tanh %74 : vector<4x32xf32>
    %76 = arith.mulf %71, %75 : vector<4x32xf32>
    %77 = vector.extract_strided_slice %76 {offsets = [0, 0], sizes = [2, 32], strides = [1, 1]} : vector<4x32xf32> to vector<2x32xf32>
    %78 = vector.extract_strided_slice %76 {offsets = [2, 0], sizes = [2, 32], strides = [1, 1]} : vector<4x32xf32> to vector<2x32xf32>
    %79 = tpu.concatenate %77, %78 in 1 : vector<2x32xf32>, vector<2x32xf32> -> vector<2x64xf32>
    %c6 = arith.constant 6 : index
    %c0_20 = arith.constant 0 : index
    %80 = vector.load %arg11[%c6, %c0_20] : memref<16x256xf32, #tpu.memory_space<vmem>>, vector<2x128xf32>
    %c8 = arith.constant 8 : index
    %c128_21 = arith.constant 128 : index
    %81 = vector.load %arg11[%c8, %c128_21] : memref<16x256xf32, #tpu.memory_space<vmem>>, vector<2x128xf32>
    %82 = arith.truncf %79 : vector<2x64xf32> to vector<2x64xbf16>
    %cst_22 = arith.constant dense<0.000000e+00> : vector<2x256xf32>
    %83 = tpu.matmul %82, %7, %cst_22 {dimension_numbers = #tpu.dot_dimension_numbers<[1], [0], [0], [1], [0, 0, 1, 1], [], []>} : vector<2x64xbf16>, vector<64x256xbf16>, vector<2x256xf32> -> vector<2x256xf32>
    %84 = vector.extract_strided_slice %83 {offsets = [0, 0], sizes = [2, 128], strides = [1, 1]} : vector<2x256xf32> to vector<2x128xf32>
    %85 = arith.addf %80, %84 : vector<2x128xf32>
    %86 = vector.extract_strided_slice %83 {offsets = [0, 128], sizes = [2, 128], strides = [1, 1]} : vector<2x256xf32> to vector<2x128xf32>
    %87 = arith.addf %81, %86 : vector<2x128xf32>
    %88 = tpu.concatenate %85, %87 in 0 : vector<2x128xf32>, vector<2x128xf32> -> vector<4x128xf32>
    %89 = arith.negf %88 : vector<4x128xf32>
    %90 = math.exp %89 : vector<4x128xf32>
    %cst_23 = arith.constant 1.000000e+00 : f32
    %91 = vector.broadcast %cst_23 : f32 to vector<4x128xf32>
    %92 = arith.addf %91, %90 : vector<4x128xf32>
    %93 = arith.divf %91, %92 : vector<4x128xf32>
    %94 = math.tanh %88 : vector<4x128xf32>
    %95 = vector.extract_strided_slice %93 {offsets = [0, 0], sizes = [4, 32], strides = [1, 1]} : vector<4x128xf32> to vector<4x32xf32>
    %96 = vector.extract_strided_slice %93 {offsets = [0, 32], sizes = [4, 32], strides = [1, 1]} : vector<4x128xf32> to vector<4x32xf32>
    %97 = vector.extract_strided_slice %94 {offsets = [0, 64], sizes = [4, 32], strides = [1, 1]} : vector<4x128xf32> to vector<4x32xf32>
    %98 = vector.extract_strided_slice %93 {offsets = [0, 96], sizes = [4, 32], strides = [1, 1]} : vector<4x128xf32> to vector<4x32xf32>
    %99 = arith.mulf %96, %74 : vector<4x32xf32>
    %100 = arith.mulf %95, %97 : vector<4x32xf32>
    %101 = arith.addf %99, %100 : vector<4x32xf32>
    %102 = math.tanh %101 : vector<4x32xf32>
    %103 = arith.mulf %98, %102 : vector<4x32xf32>
    %104 = vector.extract_strided_slice %103 {offsets = [0, 0], sizes = [2, 32], strides = [1, 1]} : vector<4x32xf32> to vector<2x32xf32>
    %105 = vector.extract_strided_slice %103 {offsets = [2, 0], sizes = [2, 32], strides = [1, 1]} : vector<4x32xf32> to vector<2x32xf32>
    %106 = tpu.concatenate %104, %105 in 1 : vector<2x32xf32>, vector<2x32xf32> -> vector<2x64xf32>
    %c8_24 = arith.constant 8 : index
    %c0_25 = arith.constant 0 : index
    %107 = vector.load %arg11[%c8_24, %c0_25] : memref<16x256xf32, #tpu.memory_space<vmem>>, vector<2x128xf32>
    %c6_26 = arith.constant 6 : index
    %c128_27 = arith.constant 128 : index
    %108 = vector.load %arg11[%c6_26, %c128_27] : memref<16x256xf32, #tpu.memory_space<vmem>>, vector<2x128xf32>
    %109 = arith.truncf %106 : vector<2x64xf32> to vector<2x64xbf16>
    %cst_28 = arith.constant dense<0.000000e+00> : vector<2x256xf32>
    %110 = tpu.matmul %109, %7, %cst_28 {dimension_numbers = #tpu.dot_dimension_numbers<[1], [0], [0], [1], [0, 0, 1, 1], [], []>} : vector<2x64xbf16>, vector<64x256xbf16>, vector<2x256xf32> -> vector<2x256xf32>
    %111 = vector.extract_strided_slice %110 {offsets = [0, 0], sizes = [2, 128], strides = [1, 1]} : vector<2x256xf32> to vector<2x128xf32>
    %112 = arith.addf %107, %111 : vector<2x128xf32>
    %113 = vector.extract_strided_slice %110 {offsets = [0, 128], sizes = [2, 128], strides = [1, 1]} : vector<2x256xf32> to vector<2x128xf32>
    %114 = arith.addf %108, %113 : vector<2x128xf32>
    %115 = tpu.concatenate %112, %114 in 0 : vector<2x128xf32>, vector<2x128xf32> -> vector<4x128xf32>
    %116 = arith.negf %115 : vector<4x128xf32>
    %117 = math.exp %116 : vector<4x128xf32>
    %cst_29 = arith.constant 1.000000e+00 : f32
    %118 = vector.broadcast %cst_29 : f32 to vector<4x128xf32>
    %119 = arith.addf %118, %117 : vector<4x128xf32>
    %120 = arith.divf %118, %119 : vector<4x128xf32>
    %121 = math.tanh %115 : vector<4x128xf32>
    %122 = vector.extract_strided_slice %120 {offsets = [0, 0], sizes = [4, 32], strides = [1, 1]} : vector<4x128xf32> to vector<4x32xf32>
    %123 = vector.extract_strided_slice %120 {offsets = [0, 32], sizes = [4, 32], strides = [1, 1]} : vector<4x128xf32> to vector<4x32xf32>
    %124 = vector.extract_strided_slice %121 {offsets = [0, 64], sizes = [4, 32], strides = [1, 1]} : vector<4x128xf32> to vector<4x32xf32>
    %125 = vector.extract_strided_slice %120 {offsets = [0, 96], sizes = [4, 32], strides = [1, 1]} : vector<4x128xf32> to vector<4x32xf32>
    %126 = arith.mulf %123, %101 : vector<4x32xf32>
    %127 = arith.mulf %122, %124 : vector<4x32xf32>
    %128 = arith.addf %126, %127 : vector<4x32xf32>
    %129 = math.tanh %128 : vector<4x32xf32>
    %130 = arith.mulf %125, %129 : vector<4x32xf32>
    %131 = vector.extract_strided_slice %130 {offsets = [0, 0], sizes = [2, 32], strides = [1, 1]} : vector<4x32xf32> to vector<2x32xf32>
    %132 = vector.extract_strided_slice %130 {offsets = [2, 0], sizes = [2, 32], strides = [1, 1]} : vector<4x32xf32> to vector<2x32xf32>
    %133 = tpu.concatenate %131, %132 in 1 : vector<2x32xf32>, vector<2x32xf32> -> vector<2x64xf32>
    %c10_30 = arith.constant 10 : index
    %c0_31 = arith.constant 0 : index
    %134 = vector.load %arg11[%c10_30, %c0_31] : memref<16x256xf32, #tpu.memory_space<vmem>>, vector<2x128xf32>
    %c4_32 = arith.constant 4 : index
    %c128_33 = arith.constant 128 : index
    %135 = vector.load %arg11[%c4_32, %c128_33] : memref<16x256xf32, #tpu.memory_space<vmem>>, vector<2x128xf32>
    %136 = arith.truncf %133 : vector<2x64xf32> to vector<2x64xbf16>
    %cst_34 = arith.constant dense<0.000000e+00> : vector<2x256xf32>
    %137 = tpu.matmul %136, %7, %cst_34 {dimension_numbers = #tpu.dot_dimension_numbers<[1], [0], [0], [1], [0, 0, 1, 1], [], []>} : vector<2x64xbf16>, vector<64x256xbf16>, vector<2x256xf32> -> vector<2x256xf32>
    %138 = vector.extract_strided_slice %137 {offsets = [0, 0], sizes = [2, 128], strides = [1, 1]} : vector<2x256xf32> to vector<2x128xf32>
    %139 = arith.addf %134, %138 : vector<2x128xf32>
    %140 = vector.extract_strided_slice %137 {offsets = [0, 128], sizes = [2, 128], strides = [1, 1]} : vector<2x256xf32> to vector<2x128xf32>
    %141 = arith.addf %135, %140 : vector<2x128xf32>
    %142 = tpu.concatenate %139, %141 in 0 : vector<2x128xf32>, vector<2x128xf32> -> vector<4x128xf32>
    %143 = arith.negf %142 : vector<4x128xf32>
    %144 = math.exp %143 : vector<4x128xf32>
    %cst_35 = arith.constant 1.000000e+00 : f32
    %145 = vector.broadcast %cst_35 : f32 to vector<4x128xf32>
    %146 = arith.addf %145, %144 : vector<4x128xf32>
    %147 = arith.divf %145, %146 : vector<4x128xf32>
    %148 = math.tanh %142 : vector<4x128xf32>
    %149 = vector.extract_strided_slice %147 {offsets = [0, 0], sizes = [4, 32], strides = [1, 1]} : vector<4x128xf32> to vector<4x32xf32>
    %150 = vector.extract_strided_slice %147 {offsets = [0, 32], sizes = [4, 32], strides = [1, 1]} : vector<4x128xf32> to vector<4x32xf32>
    %151 = vector.extract_strided_slice %148 {offsets = [0, 64], sizes = [4, 32], strides = [1, 1]} : vector<4x128xf32> to vector<4x32xf32>
    %152 = vector.extract_strided_slice %147 {offsets = [0, 96], sizes = [4, 32], strides = [1, 1]} : vector<4x128xf32> to vector<4x32xf32>
    %153 = arith.mulf %150, %128 : vector<4x32xf32>
    %154 = arith.mulf %149, %151 : vector<4x32xf32>
    %155 = arith.addf %153, %154 : vector<4x32xf32>
    %156 = math.tanh %155 : vector<4x32xf32>
    %157 = arith.mulf %152, %156 : vector<4x32xf32>
    %158 = vector.extract_strided_slice %157 {offsets = [0, 0], sizes = [2, 32], strides = [1, 1]} : vector<4x32xf32> to vector<2x32xf32>
    %159 = vector.extract_strided_slice %157 {offsets = [2, 0], sizes = [2, 32], strides = [1, 1]} : vector<4x32xf32> to vector<2x32xf32>
    %160 = tpu.concatenate %158, %159 in 1 : vector<2x32xf32>, vector<2x32xf32> -> vector<2x64xf32>
    %c12_36 = arith.constant 12 : index
    %c0_37 = arith.constant 0 : index
    %161 = vector.load %arg11[%c12_36, %c0_37] : memref<16x256xf32, #tpu.memory_space<vmem>>, vector<2x128xf32>
    %c2_38 = arith.constant 2 : index
    %c128_39 = arith.constant 128 : index
    %162 = vector.load %arg11[%c2_38, %c128_39] : memref<16x256xf32, #tpu.memory_space<vmem>>, vector<2x128xf32>
    %163 = arith.truncf %160 : vector<2x64xf32> to vector<2x64xbf16>
    %cst_40 = arith.constant dense<0.000000e+00> : vector<2x256xf32>
    %164 = tpu.matmul %163, %7, %cst_40 {dimension_numbers = #tpu.dot_dimension_numbers<[1], [0], [0], [1], [0, 0, 1, 1], [], []>} : vector<2x64xbf16>, vector<64x256xbf16>, vector<2x256xf32> -> vector<2x256xf32>
    %165 = vector.extract_strided_slice %164 {offsets = [0, 0], sizes = [2, 128], strides = [1, 1]} : vector<2x256xf32> to vector<2x128xf32>
    %166 = arith.addf %161, %165 : vector<2x128xf32>
    %167 = vector.extract_strided_slice %164 {offsets = [0, 128], sizes = [2, 128], strides = [1, 1]} : vector<2x256xf32> to vector<2x128xf32>
    %168 = arith.addf %162, %167 : vector<2x128xf32>
    %169 = tpu.concatenate %166, %168 in 0 : vector<2x128xf32>, vector<2x128xf32> -> vector<4x128xf32>
    %170 = arith.negf %169 : vector<4x128xf32>
    %171 = math.exp %170 : vector<4x128xf32>
    %cst_41 = arith.constant 1.000000e+00 : f32
    %172 = vector.broadcast %cst_41 : f32 to vector<4x128xf32>
    %173 = arith.addf %172, %171 : vector<4x128xf32>
    %174 = arith.divf %172, %173 : vector<4x128xf32>
    %175 = math.tanh %169 : vector<4x128xf32>
    %176 = vector.extract_strided_slice %174 {offsets = [0, 0], sizes = [4, 32], strides = [1, 1]} : vector<4x128xf32> to vector<4x32xf32>
    %177 = vector.extract_strided_slice %174 {offsets = [0, 32], sizes = [4, 32], strides = [1, 1]} : vector<4x128xf32> to vector<4x32xf32>
    %178 = vector.extract_strided_slice %175 {offsets = [0, 64], sizes = [4, 32], strides = [1, 1]} : vector<4x128xf32> to vector<4x32xf32>
    %179 = vector.extract_strided_slice %174 {offsets = [0, 96], sizes = [4, 32], strides = [1, 1]} : vector<4x128xf32> to vector<4x32xf32>
    %180 = arith.mulf %177, %155 : vector<4x32xf32>
    %181 = arith.mulf %176, %178 : vector<4x32xf32>
    %182 = arith.addf %180, %181 : vector<4x32xf32>
    %183 = math.tanh %182 : vector<4x32xf32>
    %184 = arith.mulf %179, %183 : vector<4x32xf32>
    %185 = vector.extract_strided_slice %184 {offsets = [0, 0], sizes = [2, 32], strides = [1, 1]} : vector<4x32xf32> to vector<2x32xf32>
    %186 = vector.extract_strided_slice %184 {offsets = [2, 0], sizes = [2, 32], strides = [1, 1]} : vector<4x32xf32> to vector<2x32xf32>
    %187 = tpu.concatenate %185, %186 in 1 : vector<2x32xf32>, vector<2x32xf32> -> vector<2x64xf32>
    %c14_42 = arith.constant 14 : index
    %c0_43 = arith.constant 0 : index
    %188 = vector.load %arg11[%c14_42, %c0_43] : memref<16x256xf32, #tpu.memory_space<vmem>>, vector<2x128xf32>
    %c0_44 = arith.constant 0 : index
    %c128_45 = arith.constant 128 : index
    %189 = vector.load %arg11[%c0_44, %c128_45] : memref<16x256xf32, #tpu.memory_space<vmem>>, vector<2x128xf32>
    %190 = arith.truncf %187 : vector<2x64xf32> to vector<2x64xbf16>
    %cst_46 = arith.constant dense<0.000000e+00> : vector<2x256xf32>
    %191 = tpu.matmul %190, %7, %cst_46 {dimension_numbers = #tpu.dot_dimension_numbers<[1], [0], [0], [1], [0, 0, 1, 1], [], []>} : vector<2x64xbf16>, vector<64x256xbf16>, vector<2x256xf32> -> vector<2x256xf32>
    %192 = vector.extract_strided_slice %191 {offsets = [0, 0], sizes = [2, 128], strides = [1, 1]} : vector<2x256xf32> to vector<2x128xf32>
    %193 = arith.addf %188, %192 : vector<2x128xf32>
    %194 = vector.extract_strided_slice %191 {offsets = [0, 128], sizes = [2, 128], strides = [1, 1]} : vector<2x256xf32> to vector<2x128xf32>
    %195 = arith.addf %189, %194 : vector<2x128xf32>
    %196 = tpu.concatenate %193, %195 in 0 : vector<2x128xf32>, vector<2x128xf32> -> vector<4x128xf32>
    %197 = arith.negf %196 : vector<4x128xf32>
    %198 = math.exp %197 : vector<4x128xf32>
    %cst_47 = arith.constant 1.000000e+00 : f32
    %199 = vector.broadcast %cst_47 : f32 to vector<4x128xf32>
    %200 = arith.addf %199, %198 : vector<4x128xf32>
    %201 = arith.divf %199, %200 : vector<4x128xf32>
    %202 = math.tanh %196 : vector<4x128xf32>
    %203 = vector.extract_strided_slice %201 {offsets = [0, 0], sizes = [4, 32], strides = [1, 1]} : vector<4x128xf32> to vector<4x32xf32>
    %204 = vector.extract_strided_slice %201 {offsets = [0, 32], sizes = [4, 32], strides = [1, 1]} : vector<4x128xf32> to vector<4x32xf32>
    %205 = vector.extract_strided_slice %202 {offsets = [0, 64], sizes = [4, 32], strides = [1, 1]} : vector<4x128xf32> to vector<4x32xf32>
    %206 = vector.extract_strided_slice %201 {offsets = [0, 96], sizes = [4, 32], strides = [1, 1]} : vector<4x128xf32> to vector<4x32xf32>
    %207 = arith.mulf %204, %182 : vector<4x32xf32>
    %208 = arith.mulf %203, %205 : vector<4x32xf32>
    %209 = arith.addf %207, %208 : vector<4x32xf32>
    %210 = math.tanh %209 : vector<4x32xf32>
    %211 = arith.mulf %206, %210 : vector<4x32xf32>
    %212 = vector.extract_strided_slice %211 {offsets = [0, 0], sizes = [2, 32], strides = [1, 1]} : vector<4x32xf32> to vector<2x32xf32>
    %213 = vector.extract_strided_slice %211 {offsets = [2, 0], sizes = [2, 32], strides = [1, 1]} : vector<4x32xf32> to vector<2x32xf32>
    %214 = tpu.concatenate %23, %50, %77, %104, %131, %158, %185, %212 in 0 : vector<2x32xf32>, vector<2x32xf32>, vector<2x32xf32>, vector<2x32xf32>, vector<2x32xf32>, vector<2x32xf32>, vector<2x32xf32>, vector<2x32xf32> -> vector<16x32xf32>
    %215 = tpu.concatenate %213, %186, %159, %132, %105, %78, %51, %24 in 0 : vector<2x32xf32>, vector<2x32xf32>, vector<2x32xf32>, vector<2x32xf32>, vector<2x32xf32>, vector<2x32xf32>, vector<2x32xf32>, vector<2x32xf32> -> vector<16x32xf32>
    %216 = tpu.concatenate %214, %215 in 1 : vector<16x32xf32>, vector<16x32xf32> -> vector<16x64xf32>
    %217 = arith.truncf %216 : vector<16x64xf32> to vector<16x64xbf16>
    %c0_48 = arith.constant 0 : index
    %c0_49 = arith.constant 0 : index
    %218 = vector.load %arg4[%c0_48, %c0_49] : memref<64x256xbf16, #tpu.memory_space<vmem>>, vector<64x256xbf16>
    %cst_50 = arith.constant dense<0.000000e+00> : vector<16x256xf32>
    %219 = tpu.matmul %217, %218, %cst_50 {dimension_numbers = #tpu.dot_dimension_numbers<[1], [0], [0], [1], [0, 0, 1, 1], [], []>} : vector<16x64xbf16>, vector<64x256xbf16>, vector<16x256xf32> -> vector<16x256xf32>
    %c0_51 = arith.constant 0 : index
    %c0_52 = arith.constant 0 : index
    %220 = vector.load %arg6[%c0_51, %c0_52] : memref<1x256xf32, #tpu.memory_space<vmem>>, vector<1x256xf32>
    %221 = vector.broadcast %220 : vector<1x256xf32> to vector<16x256xf32>
    %222 = arith.addf %219, %221 : vector<16x256xf32>
    %c0_53 = arith.constant 0 : index
    %c0_54 = arith.constant 0 : index
    %223 = vector.load %arg11[%c0_53, %c0_54] : memref<16x256xf32, #tpu.memory_space<vmem>>, vector<16x256xf32>
    tpu.vector_store %arg11[%c0_53, %c0_54], %222 {strides = array<i32>} : memref<16x256xf32, #tpu.memory_space<vmem>>, vector<16x256xf32>,
    %c0_55 = arith.constant 0 : index
    %c0_56 = arith.constant 0 : index
    %224 = vector.load %arg5[%c0_55, %c0_56] : memref<64x256xbf16, #tpu.memory_space<vmem>>, vector<64x256xbf16>
    %c0_57 = arith.constant 0 : index
    %c0_58 = arith.constant 0 : index
    %225 = vector.load %arg11[%c0_57, %c0_58] : memref<16x256xf32, #tpu.memory_space<vmem>>, vector<2x128xf32>
    %c14_59 = arith.constant 14 : index
    %c128_60 = arith.constant 128 : index
    %226 = vector.load %arg11[%c14_59, %c128_60] : memref<16x256xf32, #tpu.memory_space<vmem>>, vector<2x128xf32>
    %227 = tpu.concatenate %225, %226 in 0 : vector<2x128xf32>, vector<2x128xf32> -> vector<4x128xf32>
    %228 = arith.negf %227 : vector<4x128xf32>
    %229 = math.exp %228 : vector<4x128xf32>
    %cst_61 = arith.constant 1.000000e+00 : f32
    %230 = vector.broadcast %cst_61 : f32 to vector<4x128xf32>
    %231 = arith.addf %230, %229 : vector<4x128xf32>
    %232 = arith.divf %230, %231 : vector<4x128xf32>
    %233 = math.tanh %227 : vector<4x128xf32>
    %234 = vector.extract_strided_slice %232 {offsets = [0, 0], sizes = [4, 32], strides = [1, 1]} : vector<4x128xf32> to vector<4x32xf32>
    %235 = vector.extract_strided_slice %233 {offsets = [0, 64], sizes = [4, 32], strides = [1, 1]} : vector<4x128xf32> to vector<4x32xf32>
    %236 = vector.extract_strided_slice %232 {offsets = [0, 96], sizes = [4, 32], strides = [1, 1]} : vector<4x128xf32> to vector<4x32xf32>
    %237 = arith.mulf %234, %235 : vector<4x32xf32>
    %238 = math.tanh %237 : vector<4x32xf32>
    %239 = arith.mulf %236, %238 : vector<4x32xf32>
    %240 = vector.extract_strided_slice %239 {offsets = [0, 0], sizes = [2, 32], strides = [1, 1]} : vector<4x32xf32> to vector<2x32xf32>
    %241 = vector.extract_strided_slice %239 {offsets = [2, 0], sizes = [2, 32], strides = [1, 1]} : vector<4x32xf32> to vector<2x32xf32>
    %242 = tpu.concatenate %240, %241 in 1 : vector<2x32xf32>, vector<2x32xf32> -> vector<2x64xf32>
    %c2_62 = arith.constant 2 : index
    %c0_63 = arith.constant 0 : index
    %243 = vector.load %arg11[%c2_62, %c0_63] : memref<16x256xf32, #tpu.memory_space<vmem>>, vector<2x128xf32>
    %c12_64 = arith.constant 12 : index
    %c128_65 = arith.constant 128 : index
    %244 = vector.load %arg11[%c12_64, %c128_65] : memref<16x256xf32, #tpu.memory_space<vmem>>, vector<2x128xf32>
    %245 = arith.truncf %242 : vector<2x64xf32> to vector<2x64xbf16>
    %cst_66 = arith.constant dense<0.000000e+00> : vector<2x256xf32>
    %246 = tpu.matmul %245, %224, %cst_66 {dimension_numbers = #tpu.dot_dimension_numbers<[1], [0], [0], [1], [0, 0, 1, 1], [], []>} : vector<2x64xbf16>, vector<64x256xbf16>, vector<2x256xf32> -> vector<2x256xf32>
    %247 = vector.extract_strided_slice %246 {offsets = [0, 0], sizes = [2, 128], strides = [1, 1]} : vector<2x256xf32> to vector<2x128xf32>
    %248 = arith.addf %243, %247 : vector<2x128xf32>
    %249 = vector.extract_strided_slice %246 {offsets = [0, 128], sizes = [2, 128], strides = [1, 1]} : vector<2x256xf32> to vector<2x128xf32>
    %250 = arith.addf %244, %249 : vector<2x128xf32>
    %251 = tpu.concatenate %248, %250 in 0 : vector<2x128xf32>, vector<2x128xf32> -> vector<4x128xf32>
    %252 = arith.negf %251 : vector<4x128xf32>
    %253 = math.exp %252 : vector<4x128xf32>
    %cst_67 = arith.constant 1.000000e+00 : f32
    %254 = vector.broadcast %cst_67 : f32 to vector<4x128xf32>
    %255 = arith.addf %254, %253 : vector<4x128xf32>
    %256 = arith.divf %254, %255 : vector<4x128xf32>
    %257 = math.tanh %251 : vector<4x128xf32>
    %258 = vector.extract_strided_slice %256 {offsets = [0, 0], sizes = [4, 32], strides = [1, 1]} : vector<4x128xf32> to vector<4x32xf32>
    %259 = vector.extract_strided_slice %256 {offsets = [0, 32], sizes = [4, 32], strides = [1, 1]} : vector<4x128xf32> to vector<4x32xf32>
    %260 = vector.extract_strided_slice %257 {offsets = [0, 64], sizes = [4, 32], strides = [1, 1]} : vector<4x128xf32> to vector<4x32xf32>
    %261 = vector.extract_strided_slice %256 {offsets = [0, 96], sizes = [4, 32], strides = [1, 1]} : vector<4x128xf32> to vector<4x32xf32>
    %262 = arith.mulf %259, %237 : vector<4x32xf32>
    %263 = arith.mulf %258, %260 : vector<4x32xf32>
    %264 = arith.addf %262, %263 : vector<4x32xf32>
    %265 = math.tanh %264 : vector<4x32xf32>
    %266 = arith.mulf %261, %265 : vector<4x32xf32>
    %267 = vector.extract_strided_slice %266 {offsets = [0, 0], sizes = [2, 32], strides = [1, 1]} : vector<4x32xf32> to vector<2x32xf32>
    %268 = vector.extract_strided_slice %266 {offsets = [2, 0], sizes = [2, 32], strides = [1, 1]} : vector<4x32xf32> to vector<2x32xf32>
    %269 = tpu.concatenate %267, %268 in 1 : vector<2x32xf32>, vector<2x32xf32> -> vector<2x64xf32>
    %c4_68 = arith.constant 4 : index
    %c0_69 = arith.constant 0 : index
    %270 = vector.load %arg11[%c4_68, %c0_69] : memref<16x256xf32, #tpu.memory_space<vmem>>, vector<2x128xf32>
    %c10_70 = arith.constant 10 : index
    %c128_71 = arith.constant 128 : index
    %271 = vector.load %arg11[%c10_70, %c128_71] : memref<16x256xf32, #tpu.memory_space<vmem>>, vector<2x128xf32>
    %272 = arith.truncf %269 : vector<2x64xf32> to vector<2x64xbf16>
    %cst_72 = arith.constant dense<0.000000e+00> : vector<2x256xf32>
    %273 = tpu.matmul %272, %224, %cst_72 {dimension_numbers = #tpu.dot_dimension_numbers<[1], [0], [0], [1], [0, 0, 1, 1], [], []>} : vector<2x64xbf16>, vector<64x256xbf16>, vector<2x256xf32> -> vector<2x256xf32>
    %274 = vector.extract_strided_slice %273 {offsets = [0, 0], sizes = [2, 128], strides = [1, 1]} : vector<2x256xf32> to vector<2x128xf32>
    %275 = arith.addf %270, %274 : vector<2x128xf32>
    %276 = vector.extract_strided_slice %273 {offsets = [0, 128], sizes = [2, 128], strides = [1, 1]} : vector<2x256xf32> to vector<2x128xf32>
    %277 = arith.addf %271, %276 : vector<2x128xf32>
    %278 = tpu.concatenate %275, %277 in 0 : vector<2x128xf32>, vector<2x128xf32> -> vector<4x128xf32>
    %279 = arith.negf %278 : vector<4x128xf32>
    %280 = math.exp %279 : vector<4x128xf32>
    %cst_73 = arith.constant 1.000000e+00 : f32
    %281 = vector.broadcast %cst_73 : f32 to vector<4x128xf32>
    %282 = arith.addf %281, %280 : vector<4x128xf32>
    %283 = arith.divf %281, %282 : vector<4x128xf32>
    %284 = math.tanh %278 : vector<4x128xf32>
    %285 = vector.extract_strided_slice %283 {offsets = [0, 0], sizes = [4, 32], strides = [1, 1]} : vector<4x128xf32> to vector<4x32xf32>
    %286 = vector.extract_strided_slice %283 {offsets = [0, 32], sizes = [4, 32], strides = [1, 1]} : vector<4x128xf32> to vector<4x32xf32>
    %287 = vector.extract_strided_slice %284 {offsets = [0, 64], sizes = [4, 32], strides = [1, 1]} : vector<4x128xf32> to vector<4x32xf32>
    %288 = vector.extract_strided_slice %283 {offsets = [0, 96], sizes = [4, 32], strides = [1, 1]} : vector<4x128xf32> to vector<4x32xf32>
    %289 = arith.mulf %286, %264 : vector<4x32xf32>
    %290 = arith.mulf %285, %287 : vector<4x32xf32>
    %291 = arith.addf %289, %290 : vector<4x32xf32>
    %292 = math.tanh %291 : vector<4x32xf32>
    %293 = arith.mulf %288, %292 : vector<4x32xf32>
    %294 = vector.extract_strided_slice %293 {offsets = [0, 0], sizes = [2, 32], strides = [1, 1]} : vector<4x32xf32> to vector<2x32xf32>
    %295 = vector.extract_strided_slice %293 {offsets = [2, 0], sizes = [2, 32], strides = [1, 1]} : vector<4x32xf32> to vector<2x32xf32>
    %296 = tpu.concatenate %294, %295 in 1 : vector<2x32xf32>, vector<2x32xf32> -> vector<2x64xf32>
    %c6_74 = arith.constant 6 : index
    %c0_75 = arith.constant 0 : index
    %297 = vector.load %arg11[%c6_74, %c0_75] : memref<16x256xf32, #tpu.memory_space<vmem>>, vector<2x128xf32>
    %c8_76 = arith.constant 8 : index
    %c128_77 = arith.constant 128 : index
    %298 = vector.load %arg11[%c8_76, %c128_77] : memref<16x256xf32, #tpu.memory_space<vmem>>, vector<2x128xf32>
    %299 = arith.truncf %296 : vector<2x64xf32> to vector<2x64xbf16>
    %cst_78 = arith.constant dense<0.000000e+00> : vector<2x256xf32>
    %300 = tpu.matmul %299, %224, %cst_78 {dimension_numbers = #tpu.dot_dimension_numbers<[1], [0], [0], [1], [0, 0, 1, 1], [], []>} : vector<2x64xbf16>, vector<64x256xbf16>, vector<2x256xf32> -> vector<2x256xf32>
    %301 = vector.extract_strided_slice %300 {offsets = [0, 0], sizes = [2, 128], strides = [1, 1]} : vector<2x256xf32> to vector<2x128xf32>
    %302 = arith.addf %297, %301 : vector<2x128xf32>
    %303 = vector.extract_strided_slice %300 {offsets = [0, 128], sizes = [2, 128], strides = [1, 1]} : vector<2x256xf32> to vector<2x128xf32>
    %304 = arith.addf %298, %303 : vector<2x128xf32>
    %305 = tpu.concatenate %302, %304 in 0 : vector<2x128xf32>, vector<2x128xf32> -> vector<4x128xf32>
    %306 = arith.negf %305 : vector<4x128xf32>
    %307 = math.exp %306 : vector<4x128xf32>
    %cst_79 = arith.constant 1.000000e+00 : f32
    %308 = vector.broadcast %cst_79 : f32 to vector<4x128xf32>
    %309 = arith.addf %308, %307 : vector<4x128xf32>
    %310 = arith.divf %308, %309 : vector<4x128xf32>
    %311 = math.tanh %305 : vector<4x128xf32>
    %312 = vector.extract_strided_slice %310 {offsets = [0, 0], sizes = [4, 32], strides = [1, 1]} : vector<4x128xf32> to vector<4x32xf32>
    %313 = vector.extract_strided_slice %310 {offsets = [0, 32], sizes = [4, 32], strides = [1, 1]} : vector<4x128xf32> to vector<4x32xf32>
    %314 = vector.extract_strided_slice %311 {offsets = [0, 64], sizes = [4, 32], strides = [1, 1]} : vector<4x128xf32> to vector<4x32xf32>
    %315 = vector.extract_strided_slice %310 {offsets = [0, 96], sizes = [4, 32], strides = [1, 1]} : vector<4x128xf32> to vector<4x32xf32>
    %316 = arith.mulf %313, %291 : vector<4x32xf32>
    %317 = arith.mulf %312, %314 : vector<4x32xf32>
    %318 = arith.addf %316, %317 : vector<4x32xf32>
    %319 = math.tanh %318 : vector<4x32xf32>
    %320 = arith.mulf %315, %319 : vector<4x32xf32>
    %321 = vector.extract_strided_slice %320 {offsets = [0, 0], sizes = [2, 32], strides = [1, 1]} : vector<4x32xf32> to vector<2x32xf32>
    %322 = vector.extract_strided_slice %320 {offsets = [2, 0], sizes = [2, 32], strides = [1, 1]} : vector<4x32xf32> to vector<2x32xf32>
    %323 = tpu.concatenate %321, %322 in 1 : vector<2x32xf32>, vector<2x32xf32> -> vector<2x64xf32>
    %c8_80 = arith.constant 8 : index
    %c0_81 = arith.constant 0 : index
    %324 = vector.load %arg11[%c8_80, %c0_81] : memref<16x256xf32, #tpu.memory_space<vmem>>, vector<2x128xf32>
    %c6_82 = arith.constant 6 : index
    %c128_83 = arith.constant 128 : index
    %325 = vector.load %arg11[%c6_82, %c128_83] : memref<16x256xf32, #tpu.memory_space<vmem>>, vector<2x128xf32>
    %326 = arith.truncf %323 : vector<2x64xf32> to vector<2x64xbf16>
    %cst_84 = arith.constant dense<0.000000e+00> : vector<2x256xf32>
    %327 = tpu.matmul %326, %224, %cst_84 {dimension_numbers = #tpu.dot_dimension_numbers<[1], [0], [0], [1], [0, 0, 1, 1], [], []>} : vector<2x64xbf16>, vector<64x256xbf16>, vector<2x256xf32> -> vector<2x256xf32>
    %328 = vector.extract_strided_slice %327 {offsets = [0, 0], sizes = [2, 128], strides = [1, 1]} : vector<2x256xf32> to vector<2x128xf32>
    %329 = arith.addf %324, %328 : vector<2x128xf32>
    %330 = vector.extract_strided_slice %327 {offsets = [0, 128], sizes = [2, 128], strides = [1, 1]} : vector<2x256xf32> to vector<2x128xf32>
    %331 = arith.addf %325, %330 : vector<2x128xf32>
    %332 = tpu.concatenate %329, %331 in 0 : vector<2x128xf32>, vector<2x128xf32> -> vector<4x128xf32>
    %333 = arith.negf %332 : vector<4x128xf32>
    %334 = math.exp %333 : vector<4x128xf32>
    %cst_85 = arith.constant 1.000000e+00 : f32
    %335 = vector.broadcast %cst_85 : f32 to vector<4x128xf32>
    %336 = arith.addf %335, %334 : vector<4x128xf32>
    %337 = arith.divf %335, %336 : vector<4x128xf32>
    %338 = math.tanh %332 : vector<4x128xf32>
    %339 = vector.extract_strided_slice %337 {offsets = [0, 0], sizes = [4, 32], strides = [1, 1]} : vector<4x128xf32> to vector<4x32xf32>
    %340 = vector.extract_strided_slice %337 {offsets = [0, 32], sizes = [4, 32], strides = [1, 1]} : vector<4x128xf32> to vector<4x32xf32>
    %341 = vector.extract_strided_slice %338 {offsets = [0, 64], sizes = [4, 32], strides = [1, 1]} : vector<4x128xf32> to vector<4x32xf32>
    %342 = vector.extract_strided_slice %337 {offsets = [0, 96], sizes = [4, 32], strides = [1, 1]} : vector<4x128xf32> to vector<4x32xf32>
    %343 = arith.mulf %340, %318 : vector<4x32xf32>
    %344 = arith.mulf %339, %341 : vector<4x32xf32>
    %345 = arith.addf %343, %344 : vector<4x32xf32>
    %346 = math.tanh %345 : vector<4x32xf32>
    %347 = arith.mulf %342, %346 : vector<4x32xf32>
    %348 = vector.extract_strided_slice %347 {offsets = [0, 0], sizes = [2, 32], strides = [1, 1]} : vector<4x32xf32> to vector<2x32xf32>
    %349 = vector.extract_strided_slice %347 {offsets = [2, 0], sizes = [2, 32], strides = [1, 1]} : vector<4x32xf32> to vector<2x32xf32>
    %350 = tpu.concatenate %348, %349 in 1 : vector<2x32xf32>, vector<2x32xf32> -> vector<2x64xf32>
    %c10_86 = arith.constant 10 : index
    %c0_87 = arith.constant 0 : index
    %351 = vector.load %arg11[%c10_86, %c0_87] : memref<16x256xf32, #tpu.memory_space<vmem>>, vector<2x128xf32>
    %c4_88 = arith.constant 4 : index
    %c128_89 = arith.constant 128 : index
    %352 = vector.load %arg11[%c4_88, %c128_89] : memref<16x256xf32, #tpu.memory_space<vmem>>, vector<2x128xf32>
    %353 = arith.truncf %350 : vector<2x64xf32> to vector<2x64xbf16>
    %cst_90 = arith.constant dense<0.000000e+00> : vector<2x256xf32>
    %354 = tpu.matmul %353, %224, %cst_90 {dimension_numbers = #tpu.dot_dimension_numbers<[1], [0], [0], [1], [0, 0, 1, 1], [], []>} : vector<2x64xbf16>, vector<64x256xbf16>, vector<2x256xf32> -> vector<2x256xf32>
    %355 = vector.extract_strided_slice %354 {offsets = [0, 0], sizes = [2, 128], strides = [1, 1]} : vector<2x256xf32> to vector<2x128xf32>
    %356 = arith.addf %351, %355 : vector<2x128xf32>
    %357 = vector.extract_strided_slice %354 {offsets = [0, 128], sizes = [2, 128], strides = [1, 1]} : vector<2x256xf32> to vector<2x128xf32>
    %358 = arith.addf %352, %357 : vector<2x128xf32>
    %359 = tpu.concatenate %356, %358 in 0 : vector<2x128xf32>, vector<2x128xf32> -> vector<4x128xf32>
    %360 = arith.negf %359 : vector<4x128xf32>
    %361 = math.exp %360 : vector<4x128xf32>
    %cst_91 = arith.constant 1.000000e+00 : f32
    %362 = vector.broadcast %cst_91 : f32 to vector<4x128xf32>
    %363 = arith.addf %362, %361 : vector<4x128xf32>
    %364 = arith.divf %362, %363 : vector<4x128xf32>
    %365 = math.tanh %359 : vector<4x128xf32>
    %366 = vector.extract_strided_slice %364 {offsets = [0, 0], sizes = [4, 32], strides = [1, 1]} : vector<4x128xf32> to vector<4x32xf32>
    %367 = vector.extract_strided_slice %364 {offsets = [0, 32], sizes = [4, 32], strides = [1, 1]} : vector<4x128xf32> to vector<4x32xf32>
    %368 = vector.extract_strided_slice %365 {offsets = [0, 64], sizes = [4, 32], strides = [1, 1]} : vector<4x128xf32> to vector<4x32xf32>
    %369 = vector.extract_strided_slice %364 {offsets = [0, 96], sizes = [4, 32], strides = [1, 1]} : vector<4x128xf32> to vector<4x32xf32>
    %370 = arith.mulf %367, %345 : vector<4x32xf32>
    %371 = arith.mulf %366, %368 : vector<4x32xf32>
    %372 = arith.addf %370, %371 : vector<4x32xf32>
    %373 = math.tanh %372 : vector<4x32xf32>
    %374 = arith.mulf %369, %373 : vector<4x32xf32>
    %375 = vector.extract_strided_slice %374 {offsets = [0, 0], sizes = [2, 32], strides = [1, 1]} : vector<4x32xf32> to vector<2x32xf32>
    %376 = vector.extract_strided_slice %374 {offsets = [2, 0], sizes = [2, 32], strides = [1, 1]} : vector<4x32xf32> to vector<2x32xf32>
    %377 = tpu.concatenate %375, %376 in 1 : vector<2x32xf32>, vector<2x32xf32> -> vector<2x64xf32>
    %c12_92 = arith.constant 12 : index
    %c0_93 = arith.constant 0 : index
    %378 = vector.load %arg11[%c12_92, %c0_93] : memref<16x256xf32, #tpu.memory_space<vmem>>, vector<2x128xf32>
    %c2_94 = arith.constant 2 : index
    %c128_95 = arith.constant 128 : index
    %379 = vector.load %arg11[%c2_94, %c128_95] : memref<16x256xf32, #tpu.memory_space<vmem>>, vector<2x128xf32>
    %380 = arith.truncf %377 : vector<2x64xf32> to vector<2x64xbf16>
    %cst_96 = arith.constant dense<0.000000e+00> : vector<2x256xf32>
    %381 = tpu.matmul %380, %224, %cst_96 {dimension_numbers = #tpu.dot_dimension_numbers<[1], [0], [0], [1], [0, 0, 1, 1], [], []>} : vector<2x64xbf16>, vector<64x256xbf16>, vector<2x256xf32> -> vector<2x256xf32>
    %382 = vector.extract_strided_slice %381 {offsets = [0, 0], sizes = [2, 128], strides = [1, 1]} : vector<2x256xf32> to vector<2x128xf32>
    %383 = arith.addf %378, %382 : vector<2x128xf32>
    %384 = vector.extract_strided_slice %381 {offsets = [0, 128], sizes = [2, 128], strides = [1, 1]} : vector<2x256xf32> to vector<2x128xf32>
    %385 = arith.addf %379, %384 : vector<2x128xf32>
    %386 = tpu.concatenate %383, %385 in 0 : vector<2x128xf32>, vector<2x128xf32> -> vector<4x128xf32>
    %387 = arith.negf %386 : vector<4x128xf32>
    %388 = math.exp %387 : vector<4x128xf32>
    %cst_97 = arith.constant 1.000000e+00 : f32
    %389 = vector.broadcast %cst_97 : f32 to vector<4x128xf32>
    %390 = arith.addf %389, %388 : vector<4x128xf32>
    %391 = arith.divf %389, %390 : vector<4x128xf32>
    %392 = math.tanh %386 : vector<4x128xf32>
    %393 = vector.extract_strided_slice %391 {offsets = [0, 0], sizes = [4, 32], strides = [1, 1]} : vector<4x128xf32> to vector<4x32xf32>
    %394 = vector.extract_strided_slice %391 {offsets = [0, 32], sizes = [4, 32], strides = [1, 1]} : vector<4x128xf32> to vector<4x32xf32>
    %395 = vector.extract_strided_slice %392 {offsets = [0, 64], sizes = [4, 32], strides = [1, 1]} : vector<4x128xf32> to vector<4x32xf32>
    %396 = vector.extract_strided_slice %391 {offsets = [0, 96], sizes = [4, 32], strides = [1, 1]} : vector<4x128xf32> to vector<4x32xf32>
    %397 = arith.mulf %394, %372 : vector<4x32xf32>
    %398 = arith.mulf %393, %395 : vector<4x32xf32>
    %399 = arith.addf %397, %398 : vector<4x32xf32>
    %400 = math.tanh %399 : vector<4x32xf32>
    %401 = arith.mulf %396, %400 : vector<4x32xf32>
    %402 = vector.extract_strided_slice %401 {offsets = [0, 0], sizes = [2, 32], strides = [1, 1]} : vector<4x32xf32> to vector<2x32xf32>
    %403 = vector.extract_strided_slice %401 {offsets = [2, 0], sizes = [2, 32], strides = [1, 1]} : vector<4x32xf32> to vector<2x32xf32>
    %404 = tpu.concatenate %402, %403 in 1 : vector<2x32xf32>, vector<2x32xf32> -> vector<2x64xf32>
    %c14_98 = arith.constant 14 : index
    %c0_99 = arith.constant 0 : index
    %405 = vector.load %arg11[%c14_98, %c0_99] : memref<16x256xf32, #tpu.memory_space<vmem>>, vector<2x128xf32>
    %c0_100 = arith.constant 0 : index
    %c128_101 = arith.constant 128 : index
    %406 = vector.load %arg11[%c0_100, %c128_101] : memref<16x256xf32, #tpu.memory_space<vmem>>, vector<2x128xf32>
    %407 = arith.truncf %404 : vector<2x64xf32> to vector<2x64xbf16>
    %cst_102 = arith.constant dense<0.000000e+00> : vector<2x256xf32>
    %408 = tpu.matmul %407, %224, %cst_102 {dimension_numbers = #tpu.dot_dimension_numbers<[1], [0], [0], [1], [0, 0, 1, 1], [], []>} : vector<2x64xbf16>, vector<64x256xbf16>, vector<2x256xf32> -> vector<2x256xf32>
    %409 = vector.extract_strided_slice %408 {offsets = [0, 0], sizes = [2, 128], strides = [1, 1]} : vector<2x256xf32> to vector<2x128xf32>
    %410 = arith.addf %405, %409 : vector<2x128xf32>
    %411 = vector.extract_strided_slice %408 {offsets = [0, 128], sizes = [2, 128], strides = [1, 1]} : vector<2x256xf32> to vector<2x128xf32>
    %412 = arith.addf %406, %411 : vector<2x128xf32>
    %413 = tpu.concatenate %410, %412 in 0 : vector<2x128xf32>, vector<2x128xf32> -> vector<4x128xf32>
    %414 = arith.negf %413 : vector<4x128xf32>
    %415 = math.exp %414 : vector<4x128xf32>
    %cst_103 = arith.constant 1.000000e+00 : f32
    %416 = vector.broadcast %cst_103 : f32 to vector<4x128xf32>
    %417 = arith.addf %416, %415 : vector<4x128xf32>
    %418 = arith.divf %416, %417 : vector<4x128xf32>
    %419 = math.tanh %413 : vector<4x128xf32>
    %420 = vector.extract_strided_slice %418 {offsets = [0, 0], sizes = [4, 32], strides = [1, 1]} : vector<4x128xf32> to vector<4x32xf32>
    %421 = vector.extract_strided_slice %418 {offsets = [0, 32], sizes = [4, 32], strides = [1, 1]} : vector<4x128xf32> to vector<4x32xf32>
    %422 = vector.extract_strided_slice %419 {offsets = [0, 64], sizes = [4, 32], strides = [1, 1]} : vector<4x128xf32> to vector<4x32xf32>
    %423 = vector.extract_strided_slice %418 {offsets = [0, 96], sizes = [4, 32], strides = [1, 1]} : vector<4x128xf32> to vector<4x32xf32>
    %424 = arith.mulf %421, %399 : vector<4x32xf32>
    %425 = arith.mulf %420, %422 : vector<4x32xf32>
    %426 = arith.addf %424, %425 : vector<4x32xf32>
    %427 = math.tanh %426 : vector<4x32xf32>
    %428 = arith.mulf %423, %427 : vector<4x32xf32>
    %429 = vector.extract_strided_slice %428 {offsets = [0, 0], sizes = [2, 32], strides = [1, 1]} : vector<4x32xf32> to vector<2x32xf32>
    %430 = vector.extract_strided_slice %428 {offsets = [2, 0], sizes = [2, 32], strides = [1, 1]} : vector<4x32xf32> to vector<2x32xf32>
    %431 = tpu.concatenate %240, %267, %294, %321, %348, %375, %402, %429 in 0 : vector<2x32xf32>, vector<2x32xf32>, vector<2x32xf32>, vector<2x32xf32>, vector<2x32xf32>, vector<2x32xf32>, vector<2x32xf32>, vector<2x32xf32> -> vector<16x32xf32>
    %432 = tpu.concatenate %430, %403, %376, %349, %322, %295, %268, %241 in 0 : vector<2x32xf32>, vector<2x32xf32>, vector<2x32xf32>, vector<2x32xf32>, vector<2x32xf32>, vector<2x32xf32>, vector<2x32xf32>, vector<2x32xf32> -> vector<16x32xf32>
    %c0_104 = arith.constant 0 : index
    %c0_105 = arith.constant 0 : index
    %433 = vector.load %arg7[%c0_104, %c0_105] : memref<16x32xf32, #tpu.memory_space<vmem>>, vector<16x32xf32>
    tpu.vector_store %arg7[%c0_104, %c0_105], %431 {strides = array<i32>} : memref<16x32xf32, #tpu.memory_space<vmem>>, vector<16x32xf32>,
    %c0_106 = arith.constant 0 : index
    %c0_107 = arith.constant 0 : index
    %434 = vector.load %arg8[%c0_106, %c0_107] : memref<16x32xf32, #tpu.memory_space<vmem>>, vector<16x32xf32>
    tpu.vector_store %arg8[%c0_106, %c0_107], %432 {strides = array<i32>} : memref<16x32xf32, #tpu.memory_space<vmem>>, vector<16x32xf32>,
    %c0_108 = arith.constant 0 : index
    %c0_109 = arith.constant 0 : index
    %435 = vector.load %arg9[%c0_108, %c0_109] : memref<2x32xf32, #tpu.memory_space<vmem>>, vector<2x32xf32>
    tpu.vector_store %arg9[%c0_108, %c0_109], %429 {strides = array<i32>} : memref<2x32xf32, #tpu.memory_space<vmem>>, vector<2x32xf32>,
    %c0_110 = arith.constant 0 : index
    %c0_111 = arith.constant 0 : index
    %436 = vector.load %arg10[%c0_110, %c0_111] : memref<2x32xf32, #tpu.memory_space<vmem>>, vector<2x32xf32>
    tpu.vector_store %arg10[%c0_110, %c0_111], %430 {strides = array<i32>} : memref<2x32xf32, #tpu.memory_space<vmem>>, vector<2x32xf32>,
    return
  }
}

</mosaic_0001>

<llo_original>
// kernel: bilstm_forward.1
$region0: #{bilstm_forward.1}
  #allocation0 [shape = 'u32[]', space=smem, size = 0x4, offset = 0x4, fixed_abs, tag = 'smem constant byte address 0x4 - core index']
  #allocation1 [shape = 'u32[72,128]{1,0:T(1,128)}', space=vmem, size = 0x9000, scoped, tag = 'internal scratch']
  #allocation2 [shape = 'f32[16,256]{1,0:T(8,128)}', space=vmem, size = 0x4000, scoped, tag = 'scratch operand']
  %s0 = inlined_call_operand.vmem [shape: bf16[16,16], index: 0, kind: input, shape index: {}]
  %s1 = inlined_call_operand.vmem [shape: bf16[16,256], index: 1, kind: input, shape index: {}]
  %s2 = inlined_call_operand.hbm [shape: bf16[64,256], index: 2, kind: input, shape index: {}]
  %s3 = inlined_call_operand.vmem [shape: f32[1,256], index: 3, kind: input, shape index: {}]
  %s4 = inlined_call_operand.hbm [shape: bf16[64,256], index: 4, kind: input, shape index: {}]
  %s5 = inlined_call_operand.hbm [shape: bf16[64,256], index: 5, kind: input, shape index: {}]
  %s6 = inlined_call_operand.vmem [shape: f32[1,256], index: 6, kind: input, shape index: {}]
  %s7 = inlined_call_operand.hbm [shape: f32[16,32], index: 7, kind: output, shape index: {0}]
  %s8 = inlined_call_operand.hbm [shape: f32[16,32], index: 8, kind: output, shape index: {1}]
  %s9 = inlined_call_operand.hbm [shape: f32[2,32], index: 9, kind: output, shape index: {2}]
  %s10 = inlined_call_operand.hbm [shape: f32[2,32], index: 10, kind: output, shape index: {3}]
  %11 = xla_tuple %s7, %s8, %s9, %s10
  %s12 = sld [smem:[#allocation0]]
  $region74: #{bilstm_forward.1} parent=0
    _
  %s14 = ssub.s32 1, %s12
  %s15 = scalar_select 0, %s14, %s12
  $region1: #{bilstm_forward.1} parent=0
    #allocation3 [shape = 'u8[32768]{0}', space=vmem, size = 0x8000, scoped, tag = 'input window, operand 2, single buffered']
    #allocation4 [shape = 's32[1]{0}', space=sflag, size = 0x4, scoped, tag = 'scoped memory for bilstm_forward.1']
    #allocation5 [shape = 's32[1]{0}', space=sflag, size = 0x4, scoped, tag = 'scoped memory for bilstm_forward.1']
    #allocation6 [shape = 'u8[32768]{0}', space=vmem, size = 0x8000, scoped, tag = 'input window, operand 4, single buffered']
    #allocation7 [shape = 's32[1]{0}', space=sflag, size = 0x4, scoped, tag = 'scoped memory for bilstm_forward.1']
    #allocation8 [shape = 'u8[32768]{0}', space=vmem, size = 0x8000, scoped, tag = 'input window, operand 5, single buffered']
    #allocation9 [shape = 'u8[8192]{0}', space=vmem, size = 0x2000, scoped, tag = 'output window, operand 0, single buffered']
    #allocation10 [shape = 'u8[8192]{0}', space=vmem, size = 0x2000, scoped, tag = 'output window, operand 1, single buffered']
    #allocation11 [shape = 's32[1]{0}', space=sflag, size = 0x4, scoped, tag = 'scoped memory for bilstm_forward.1']
    #allocation12 [shape = 'u8[1024]{0}', space=vmem, size = 0x400, scoped, tag = 'output window, operand 2, single buffered']
    #allocation13 [shape = 'u8[1024]{0}', space=vmem, size = 0x400, scoped, tag = 'output window, operand 3, single buffered']
    #allocation14 [shape = 's32[1]{0}', space=sflag, size = 0x4, scoped, tag = 'scoped memory for bilstm_forward.1']
    %16 = vsyncpa [#allocation4], 0
    %17 = vsyncpa [#allocation7], 0
    %18 = vsyncpa [#allocation5], 0
    %19 = vsyncpa [#allocation11], 0
    %20 = vsyncpa [#allocation14], 0
    // Predicated region
    $region2: #{bilstm_forward.1} parent=1 // pred_check
      _
    $region3: #{bilstm_forward.1} parent=1 // pred_check_branch
      %22 = sbr.rel (0) target = $region5
    $region4: #{bilstm_forward.1} parent=1 // pred_region
      _
    $region5: #{bilstm_forward.1} parent=1 // pred_fallthru
      _
    // Predicated region
    $region6: #{bilstm_forward.1} parent=1 // pred_check
      _
    $region7: #{bilstm_forward.1} parent=1 // pred_check_branch
      %24 = sbr.rel (0) target = $region9
    $region8: #{bilstm_forward.1} parent=1 // pred_region
      _
    $region9: #{bilstm_forward.1} parent=1 // pred_fallthru
      _
    // Predicated region
    $region10: #{bilstm_forward.1} parent=1 // pred_check
      _
    $region11: #{bilstm_forward.1} parent=1 // pred_check_branch
      %26 = sbr.rel (0) target = $region13
    $region12: #{bilstm_forward.1} parent=1 // pred_region
      %28 = vsyncadd [#allocation4], 0
      %s29 = sshll.u32 %s2, 4
      %s30 = int_to_ptr.hbm [resolvable:$true] %s29
      %s31 = sshll.u32 [#allocation3], 4
      %s32 = int_to_ptr.vmem [resolvable:$true] %s31
      %37 = dma.hbm_to_vmem [thread:$0]  %s30, 1024, %s32, [#allocation4], 128, 128, 8
    $region13: #{bilstm_forward.1} parent=1 // pred_fallthru
      _
    // Predicated region
    $region14: #{bilstm_forward.1} parent=1 // pred_check
      _
    $region15: #{bilstm_forward.1} parent=1 // pred_check_branch
      %39 = sbr.rel (0) target = $region17
    $region16: #{bilstm_forward.1} parent=1 // pred_region
      _
    $region17: #{bilstm_forward.1} parent=1 // pred_fallthru
      _
    // Predicated region
    $region18: #{bilstm_forward.1} parent=1 // pred_check
      _
    $region19: #{bilstm_forward.1} parent=1 // pred_check_branch
      %41 = sbr.rel (0) target = $region21
    $region20: #{bilstm_forward.1} parent=1 // pred_region
      %43 = vsyncadd [#allocation7], 0
      %s44 = sshll.u32 %s4, 4
      %s45 = int_to_ptr.hbm [resolvable:$true] %s44
      %s46 = sshll.u32 [#allocation6], 4
      %s47 = int_to_ptr.vmem [resolvable:$true] %s46
      %52 = dma.hbm_to_vmem [thread:$0]  %s45, 1024, %s47, [#allocation7], 128, 128, 8
    $region21: #{bilstm_forward.1} parent=1 // pred_fallthru
      _
    // Predicated region
    $region22: #{bilstm_forward.1} parent=1 // pred_check
      _
    $region23: #{bilstm_forward.1} parent=1 // pred_check_branch
      %54 = sbr.rel (0) target = $region25
    $region24: #{bilstm_forward.1} parent=1 // pred_region
      %56 = vsyncadd [#allocation7], 0
      %s57 = sshll.u32 %s5, 4
      %s58 = int_to_ptr.hbm [resolvable:$true] %s57
      %s59 = sshll.u32 [#allocation8], 4
      %s60 = int_to_ptr.vmem [resolvable:$true] %s59
      %65 = dma.hbm_to_vmem [thread:$0]  %s58, 1024, %s60, [#allocation7], 128, 128, 8
    $region25: #{bilstm_forward.1} parent=1 // pred_fallthru
      _
    // Predicated region
    $region26: #{bilstm_forward.1} parent=1 // pred_check
      _
    $region27: #{bilstm_forward.1} parent=1 // pred_check_branch
      %67 = sbr.rel (0) target = $region29
    $region28: #{bilstm_forward.1} parent=1 // pred_region
      _
    $region29: #{bilstm_forward.1} parent=1 // pred_fallthru
      _
    // Predicated region
    $region30: #{bilstm_forward.1} parent=1 // pred_check
      _
    $region31: #{bilstm_forward.1} parent=1 // pred_check_branch
      %69 = sbr.rel (0) target = $region33
    $region32: #{bilstm_forward.1} parent=1 // pred_region
      %71 = dma.done [#allocation4], 1024
    $region33: #{bilstm_forward.1} parent=1 // pred_fallthru
      _
    // Predicated region
    $region34: #{bilstm_forward.1} parent=1 // pred_check
      _
    $region35: #{bilstm_forward.1} parent=1 // pred_check_branch
      %73 = sbr.rel (0) target = $region37
    $region36: #{bilstm_forward.1} parent=1 // pred_region
      %75 = dma.done [#allocation7], 1024
    $region37: #{bilstm_forward.1} parent=1 // pred_fallthru
      _
    // Predicated region
    $region38: #{bilstm_forward.1} parent=1 // pred_check
      _
    $region39: #{bilstm_forward.1} parent=1 // pred_check_branch
      %77 = sbr.rel (0) target = $region41
    $region40: #{bilstm_forward.1} parent=1 // pred_region
      %79 = dma.done [#allocation7], 1024
    $region41: #{bilstm_forward.1} parent=1 // pred_fallthru
      _
    %v81 = vld [vmem:[%s0] sm:$0xf]
    %v82 = vld [vmem:[%s0 + $0x4] sm:$0xf]
    %v83 = vld [vmem:[%s1] sm:$0xff]
    %v84 = vld [vmem:[%s1 + $0x8] sm:$0xff]
    %v85 = vld [vmem:[%s3] sm:$0x3]
    %v87 = vperm.slane %v85, 0
    %v88 = vperm.slane %v85, 1
    %v93 = vunpack.c.l.b16 %v81
    %v94 = vunpack.c.l.b16 %v82
    %v95 = vpack.c.b16 %v94, %v93
    %v98 = vunpack.c.l.b16 %v83
    %v99 = vunpack.c.h.b16 %v83
    %v100 = vunpack.c.l.b16 %v84
    %v101 = vunpack.c.h.b16 %v84
    %v102 = vpack.c.b16 %v100, %v98
    %v103 = vpack.c.b16 %v101, %v99
    %vm106 = vcmask 130048
    %v108 = vsel %vm106, %v95, 0
    %110 = vmatpush.bf16.msra.mxu0 0
    %111 = vmatpush.bf16.msra.mxu0 0
    %112 = vmatpush.bf16.msra.mxu0 0
    %113 = vmatpush.bf16.msra.mxu0 0
    %114 = vmatpush.bf16.msra.mxu0 0
    %115 = vmatpush.bf16.msra.mxu0 0
    %116 = vmatpush.bf16.msra.mxu0 0
    %117 = vmatpush.bf16.msra.mxu0 %v102
    %118 = vmatmul.bf16.gmra.mxu0 %v108
    %v119 = vpop.f32.mrf.mxu0
    %v120 = vadd.f32 %v87, %v119
    %v121 = vpop.f32.mrf.mxu0
    %v122 = vadd.f32 %v87, %v121
    %123 = vdwg.mxu0
    %124 = vmatpush.bf16.msra.mxu0 0
    %125 = vmatpush.bf16.msra.mxu0 0
    %126 = vmatpush.bf16.msra.mxu0 0
    %127 = vmatpush.bf16.msra.mxu0 0
    %128 = vmatpush.bf16.msra.mxu0 0
    %129 = vmatpush.bf16.msra.mxu0 0
    %130 = vmatpush.bf16.msra.mxu0 0
    %131 = vmatpush.bf16.msra.mxu0 %v103
    %132 = vmatmul.bf16.gmra.mxu0 %v108
    %v133 = vpop.f32.mrf.mxu0
    %v134 = vadd.f32 %v88, %v133
    %v135 = vpop.f32.mrf.mxu0
    %v136 = vadd.f32 %v88, %v135
    %137 = vdwg.mxu0
    %138 = vst [vmem:[#allocation2] sm:$0xff] %v120
    %139 = vst [vmem:[#allocation2 + $0x8] sm:$0xff] %v134
    %140 = vst [vmem:[#allocation2 + $0x10] sm:$0xff] %v122
    %141 = vst [vmem:[#allocation2 + $0x18] sm:$0xff] %v136
    %v142 = vld [vmem:[#allocation3] sm:$0xff]
    %v143 = vld [vmem:[#allocation3 + $0x8] sm:$0xff]
    %v144 = vld [vmem:[#allocation3 + $0x10] sm:$0xff]
    %v145 = vld [vmem:[#allocation3 + $0x18] sm:$0xff]
    %v146 = vld [vmem:[#allocation3 + $0x20] sm:$0xff]
    %v147 = vld [vmem:[#allocation3 + $0x28] sm:$0xff]
    %v148 = vld [vmem:[#allocation3 + $0x30] sm:$0xff]
    %v149 = vld [vmem:[#allocation3 + $0x38] sm:$0xff]
    %v150 = vld [vmem:[#allocation2] sm:$0x3]
    %v151 = vld [vmem:[#allocation2 + $0x18] sm:$0xc0]
    %v153 = vrot.slane %v151, 4
    %vm155 = vcmask 1041408
    %v156 = vsel %vm155, %v150, %v153
    %v157 = vxor.u32 %v156, 2147483648
    %v158 = vmul.f32 %v157, 1.442695
    %v159 = vpow.pop %v158
    %v160 = vadd.f32 %v159, 1.0
    %v161 = vrcp.pop %v160
    %v162 = vmul.f32 %v160, %v161
    %v163 = vsub.f32 1.0, %v162
    %v164 = vmul.f32 %v161, %v163
    %v165 = vadd.f32 %v161, %v164
    %vm166 = vweird.f32 %v160
    %vm167 = vweird.f32 %v161
    %vm168 = vmor %vm166, %vm167
    %v169 = vsel %vm168, %v161, %v165
    %v170 = vand.u32 2147483647, %v160
    %vm171 = vcmp.eq.f32.partialorder %v170, 8.507059e+37
    %v172 = vand.u32 %v160, 2147483648
    %v173 = vor.u32 1.1754944e-38, %v172
    %v174 = vsel %vm171, %v173, %v169
    %v175 = vmul.f32 1.0, %v174
    %v176 = vtanh.pop %v156
    %178 = vrot.lane.b32.xlu0 %v176, 64
    %v179 = vpop.permute.xlu0 %178
    %v181 = vmul.f32 %v175, %v179
    %v182 = vtanh.pop %v181
    %184 = vrot.lane.b32.xlu0 %v182, 96
    %v185 = vpop.permute.xlu0 %184
    %v187 = vmul.f32 %v175, %v185
    %189 = vrot.lane.b32.xlu0 %v187, 32
    %v190 = vpop.permute.xlu0 %189
    %v192 = vrot.slane %v187, 2
    %193 = vrot.lane.b32.xlu0 %v192, 64
    %v194 = vpop.permute.xlu0 %193
    %vm196 = vcmask 261120
    %v197 = vsel %vm196, %v190, %v194
    %v198 = vld [vmem:[#allocation2] sm:$0xc]
    %v199 = vld [vmem:[#allocation2 + $0x18] sm:$0x30]
    %v200 = vpack.c.bf16 %v197, %v197
    %v209 = vunpack.c.l.b16 %v142
    %v210 = vunpack.c.h.b16 %v142
    %v211 = vunpack.c.l.b16 %v143
    %v212 = vunpack.c.h.b16 %v143
    %v213 = vunpack.c.l.b16 %v144
    %v214 = vunpack.c.h.b16 %v144
    %v215 = vunpack.c.l.b16 %v145
    %v216 = vunpack.c.h.b16 %v145
    %v217 = vunpack.c.l.b16 %v146
    %v218 = vunpack.c.h.b16 %v146
    %v219 = vunpack.c.l.b16 %v147
    %v220 = vunpack.c.h.b16 %v147
    %v221 = vunpack.c.l.b16 %v148
    %v222 = vunpack.c.h.b16 %v148
    %v223 = vunpack.c.l.b16 %v149
    %v224 = vunpack.c.h.b16 %v149
    %v225 = vpack.c.b16 %v211, %v209
    %v226 = vpack.c.b16 %v212, %v210
    %v227 = vpack.c.b16 %v215, %v213
    %v228 = vpack.c.b16 %v216, %v214
    %v229 = vpack.c.b16 %v219, %v217
    %v230 = vpack.c.b16 %v220, %v218
    %v231 = vpack.c.b16 %v223, %v221
    %v232 = vpack.c.b16 %v224, %v222
    %vm241 = vcmask 523264
    %v243 = vsel %vm241, %v200, 0
    %245 = vmatpush.bf16.msra.mxu0 0
    %246 = vmatpush.bf16.msra.mxu0 0
    %247 = vmatpush.bf16.msra.mxu0 0
    %248 = vmatpush.bf16.msra.mxu0 0
    %249 = vmatpush.bf16.msra.mxu0 %v231
    %250 = vmatpush.bf16.msra.mxu0 %v229
    %251 = vmatpush.bf16.msra.mxu0 %v227
    %252 = vmatpush.bf16.msra.mxu0 %v225
    %253 = vmatmul.bf16.gmra.mxu0 %v243
    %v254 = vpop.f32.mrf.mxu0
    %v255 = vadd.f32 0.0, %v254
    %v256 = vpop.f32.mrf.mxu0
    %257 = vdwg.mxu0
    %258 = vmatpush.bf16.msra.mxu0 0
    %259 = vmatpush.bf16.msra.mxu0 0
    %260 = vmatpush.bf16.msra.mxu0 0
    %261 = vmatpush.bf16.msra.mxu0 0
    %262 = vmatpush.bf16.msra.mxu0 %v232
    %263 = vmatpush.bf16.msra.mxu0 %v230
    %264 = vmatpush.bf16.msra.mxu0 %v228
    %265 = vmatpush.bf16.msra.mxu0 %v226
    %266 = vmatmul.bf16.gmra.mxu0 %v243
    %v267 = vpop.f32.mrf.mxu0
    %v268 = vadd.f32 0.0, %v267
    %v269 = vpop.f32.mrf.mxu0
    %270 = vdwg.mxu0
    %v272 = vrot.slane %v255, 6
    %v274 = vadd.f32 %v198, %v272
    %v276 = vrot.slane %v268, 4
    %v278 = vadd.f32 %v199, %v276
    %v280 = vrot.slane %v274, 2
    %v283 = vrot.slane %v278, 2
    %v285 = vsel %vm155, %v280, %v283
    %v286 = vxor.u32 %v285, 2147483648
    %v287 = vmul.f32 %v286, 1.442695
    %v288 = vpow.pop %v287
    %v289 = vadd.f32 %v288, 1.0
    %v290 = vrcp.pop %v289
    %v291 = vmul.f32 %v289, %v290
    %v292 = vsub.f32 1.0, %v291
    %v293 = vmul.f32 %v290, %v292
    %v294 = vadd.f32 %v290, %v293
    %vm295 = vweird.f32 %v289
    %vm296 = vweird.f32 %v290
    %vm297 = vmor %vm295, %vm296
    %v298 = vsel %vm297, %v290, %v294
    %v299 = vand.u32 2147483647, %v289
    %vm300 = vcmp.eq.f32.partialorder %v299, 8.507059e+37
    %v301 = vand.u32 %v289, 2147483648
    %v302 = vor.u32 1.1754944e-38, %v301
    %v303 = vsel %vm300, %v302, %v298
    %v304 = vmul.f32 1.0, %v303
    %v305 = vtanh.pop %v285
    %307 = vrot.lane.b32.xlu0 %v181, 32
    %v308 = vpop.permute.xlu0 %307
    %v310 = vmul.f32 %v304, %v308
    %312 = vrot.lane.b32.xlu0 %v305, 64
    %v313 = vpop.permute.xlu0 %312
    %v315 = vmul.f32 %v304, %v313
    %317 = vrot.lane.b32.xlu0 %v315, 32
    %v318 = vpop.permute.xlu0 %317
    %v320 = vadd.f32 %v310, %v318
    %v321 = vtanh.pop %v320
    %323 = vrot.lane.b32.xlu0 %v321, 64
    %v324 = vpop.permute.xlu0 %323
    %v326 = vmul.f32 %v304, %v324
    %328 = vrot.lane.b32.xlu0 %v326, 32
    %v329 = vpop.permute.xlu0 %328
    %v331 = vrot.slane %v326, 2
    %332 = vrot.lane.b32.xlu0 %v331, 64
    %v333 = vpop.permute.xlu0 %332
    %v335 = vsel %vm196, %v329, %v333
    %v336 = vld [vmem:[#allocation2] sm:$0x30]
    %v337 = vld [vmem:[#allocation2 + $0x18] sm:$0xc]
    %v338 = vpack.c.bf16 %v335, %v335
    %v340 = vsel %vm241, %v338, 0
    %342 = vmatpush.bf16.msra.mxu0 0
    %343 = vmatpush.bf16.msra.mxu0 0
    %344 = vmatpush.bf16.msra.mxu0 0
    %345 = vmatpush.bf16.msra.mxu0 0
    %346 = vmatpush.bf16.msra.mxu0 %v231
    %347 = vmatpush.bf16.msra.mxu0 %v229
    %348 = vmatpush.bf16.msra.mxu0 %v227
    %349 = vmatpush.bf16.msra.mxu0 %v225
    %350 = vmatmul.bf16.gmra.mxu0 %v340
    %v351 = vpop.f32.mrf.mxu0
    %v352 = vadd.f32 0.0, %v351
    %v353 = vpop.f32.mrf.mxu0
    %354 = vdwg.mxu0
    %355 = vmatpush.bf16.msra.mxu0 0
    %356 = vmatpush.bf16.msra.mxu0 0
    %357 = vmatpush.bf16.msra.mxu0 0
    %358 = vmatpush.bf16.msra.mxu0 0
    %359 = vmatpush.bf16.msra.mxu0 %v232
    %360 = vmatpush.bf16.msra.mxu0 %v230
    %361 = vmatpush.bf16.msra.mxu0 %v228
    %362 = vmatpush.bf16.msra.mxu0 %v226
    %363 = vmatmul.bf16.gmra.mxu0 %v340
    %v364 = vpop.f32.mrf.mxu0
    %v365 = vadd.f32 0.0, %v364
    %v366 = vpop.f32.mrf.mxu0
    %367 = vdwg.mxu0
    %v369 = vrot.slane %v352, 4
    %v371 = vadd.f32 %v336, %v369
    %v373 = vrot.slane %v365, 6
    %v375 = vadd.f32 %v337, %v373
    %v377 = vrot.slane %v371, 4
    %v379 = vsel %vm155, %v377, %v375
    %v380 = vxor.u32 %v379, 2147483648
    %v381 = vmul.f32 %v380, 1.442695
    %v382 = vpow.pop %v381
    %v383 = vadd.f32 %v382, 1.0
    %v384 = vrcp.pop %v383
    %v385 = vmul.f32 %v383, %v384
    %v386 = vsub.f32 1.0, %v385
    %v387 = vmul.f32 %v384, %v386
    %v388 = vadd.f32 %v384, %v387
    %vm389 = vweird.f32 %v383
    %vm390 = vweird.f32 %v384
    %vm391 = vmor %vm389, %vm390
    %v392 = vsel %vm391, %v384, %v388
    %v393 = vand.u32 2147483647, %v383
    %vm394 = vcmp.eq.f32.partialorder %v393, 8.507059e+37
    %v395 = vand.u32 %v383, 2147483648
    %v396 = vor.u32 1.1754944e-38, %v395
    %v397 = vsel %vm394, %v396, %v392
    %v398 = vmul.f32 1.0, %v397
    %v399 = vtanh.pop %v379
    %v400 = vmul.f32 %v398, %v320
    %402 = vrot.lane.b32.xlu0 %v399, 64
    %v403 = vpop.permute.xlu0 %402
    %v405 = vmul.f32 %v398, %v403
    %407 = vrot.lane.b32.xlu0 %v405, 32
    %v408 = vpop.permute.xlu0 %407
    %v410 = vadd.f32 %v400, %v408
    %v411 = vtanh.pop %v410
    %413 = vrot.lane.b32.xlu0 %v411, 64
    %v414 = vpop.permute.xlu0 %413
    %v416 = vmul.f32 %v398, %v414
    %418 = vrot.lane.b32.xlu0 %v416, 32
    %v419 = vpop.permute.xlu0 %418
    %v421 = vrot.slane %v416, 2
    %422 = vrot.lane.b32.xlu0 %v421, 64
    %v423 = vpop.permute.xlu0 %422
    %v425 = vsel %vm196, %v419, %v423
    %v426 = vld [vmem:[#allocation2] sm:$0xc0]
    %v427 = vld [vmem:[#allocation2 + $0x18] sm:$0x3]
    %v428 = vpack.c.bf16 %v425, %v425
    %v430 = vsel %vm241, %v428, 0
    %432 = vmatpush.bf16.msra.mxu0 0
    %433 = vmatpush.bf16.msra.mxu0 0
    %434 = vmatpush.bf16.msra.mxu0 0
    %435 = vmatpush.bf16.msra.mxu0 0
    %436 = vmatpush.bf16.msra.mxu0 %v231
    %437 = vmatpush.bf16.msra.mxu0 %v229
    %438 = vmatpush.bf16.msra.mxu0 %v227
    %439 = vmatpush.bf16.msra.mxu0 %v225
    %440 = vmatmul.bf16.gmra.mxu0 %v430
    %v441 = vpop.f32.mrf.mxu0
    %v442 = vadd.f32 0.0, %v441
    %v443 = vpop.f32.mrf.mxu0
    %444 = vdwg.mxu0
    %445 = vmatpush.bf16.msra.mxu0 0
    %446 = vmatpush.bf16.msra.mxu0 0
    %447 = vmatpush.bf16.msra.mxu0 0
    %448 = vmatpush.bf16.msra.mxu0 0
    %449 = vmatpush.bf16.msra.mxu0 %v232
    %450 = vmatpush.bf16.msra.mxu0 %v230
    %451 = vmatpush.bf16.msra.mxu0 %v228
    %452 = vmatpush.bf16.msra.mxu0 %v226
    %453 = vmatmul.bf16.gmra.mxu0 %v430
    %v454 = vpop.f32.mrf.mxu0
    %v455 = vadd.f32 0.0, %v454
    %v456 = vpop.f32.mrf.mxu0
    %457 = vdwg.mxu0
    %v459 = vrot.slane %v442, 2
    %v461 = vadd.f32 %v426, %v459
    %v462 = vadd.f32 %v427, %v455
    %v464 = vrot.slane %v461, 6
    %v467 = vrot.slane %v462, 6
    %v469 = vsel %vm155, %v464, %v467
    %v470 = vxor.u32 %v469, 2147483648
    %v471 = vmul.f32 %v470, 1.442695
    %v472 = vpow.pop %v471
    %v473 = vadd.f32 %v472, 1.0
    %v474 = vrcp.pop %v473
    %v475 = vmul.f32 %v473, %v474
    %v476 = vsub.f32 1.0, %v475
    %v477 = vmul.f32 %v474, %v476
    %v478 = vadd.f32 %v474, %v477
    %vm479 = vweird.f32 %v473
    %vm480 = vweird.f32 %v474
    %vm481 = vmor %vm479, %vm480
    %v482 = vsel %vm481, %v474, %v478
    %v483 = vand.u32 2147483647, %v473
    %vm484 = vcmp.eq.f32.partialorder %v483, 8.507059e+37
    %v485 = vand.u32 %v473, 2147483648
    %v486 = vor.u32 1.1754944e-38, %v485
    %v487 = vsel %vm484, %v486, %v482
    %v488 = vmul.f32 1.0, %v487
    %v489 = vtanh.pop %v469
    %v490 = vmul.f32 %v488, %v410
    %492 = vrot.lane.b32.xlu0 %v489, 64
    %v493 = vpop.permute.xlu0 %492
    %v495 = vmul.f32 %v488, %v493
    %497 = vrot.lane.b32.xlu0 %v495, 32
    %v498 = vpop.permute.xlu0 %497
    %v500 = vadd.f32 %v490, %v498
    %v501 = vtanh.pop %v500
    %503 = vrot.lane.b32.xlu0 %v501, 64
    %v504 = vpop.permute.xlu0 %503
    %v506 = vmul.f32 %v488, %v504
    %508 = vrot.lane.b32.xlu0 %v506, 32
    %v509 = vpop.permute.xlu0 %508
    %v511 = vrot.slane %v506, 2
    %512 = vrot.lane.b32.xlu0 %v511, 64
    %v513 = vpop.permute.xlu0 %512
    %v515 = vsel %vm196, %v509, %v513
    %v516 = vld [vmem:[#allocation2 + $0x10] sm:$0x3]
    %v517 = vld [vmem:[#allocation2 + $0x8] sm:$0xc0]
    %v518 = vpack.c.bf16 %v515, %v515
    %v520 = vsel %vm241, %v518, 0
    %522 = vmatpush.bf16.msra.mxu0 0
    %523 = vmatpush.bf16.msra.mxu0 0
    %524 = vmatpush.bf16.msra.mxu0 0
    %525 = vmatpush.bf16.msra.mxu0 0
    %526 = vmatpush.bf16.msra.mxu0 %v231
    %527 = vmatpush.bf16.msra.mxu0 %v229
    %528 = vmatpush.bf16.msra.mxu0 %v227
    %529 = vmatpush.bf16.msra.mxu0 %v225
    %530 = vmatmul.bf16.gmra.mxu0 %v520
    %v531 = vpop.f32.mrf.mxu0
    %v532 = vadd.f32 0.0, %v531
    %v533 = vpop.f32.mrf.mxu0
    %534 = vdwg.mxu0
    %535 = vmatpush.bf16.msra.mxu0 0
    %536 = vmatpush.bf16.msra.mxu0 0
    %537 = vmatpush.bf16.msra.mxu0 0
    %538 = vmatpush.bf16.msra.mxu0 0
    %539 = vmatpush.bf16.msra.mxu0 %v232
    %540 = vmatpush.bf16.msra.mxu0 %v230
    %541 = vmatpush.bf16.msra.mxu0 %v228
    %542 = vmatpush.bf16.msra.mxu0 %v226
    %543 = vmatmul.bf16.gmra.mxu0 %v520
    %v544 = vpop.f32.mrf.mxu0
    %v545 = vadd.f32 0.0, %v544
    %v546 = vpop.f32.mrf.mxu0
    %547 = vdwg.mxu0
    %v548 = vadd.f32 %v516, %v532
    %v550 = vrot.slane %v545, 2
    %v552 = vadd.f32 %v517, %v550
    %v554 = vrot.slane %v552, 4
    %v556 = vsel %vm155, %v548, %v554
    %v557 = vxor.u32 %v556, 2147483648
    %v558 = vmul.f32 %v557, 1.442695
    %v559 = vpow.pop %v558
    %v560 = vadd.f32 %v559, 1.0
    %v561 = vrcp.pop %v560
    %v562 = vmul.f32 %v560, %v561
    %v563 = vsub.f32 1.0, %v562
    %v564 = vmul.f32 %v561, %v563
    %v565 = vadd.f32 %v561, %v564
    %vm566 = vweird.f32 %v560
    %vm567 = vweird.f32 %v561
    %vm568 = vmor %vm566, %vm567
    %v569 = vsel %vm568, %v561, %v565
    %v570 = vand.u32 2147483647, %v560
    %vm571 = vcmp.eq.f32.partialorder %v570, 8.507059e+37
    %v572 = vand.u32 %v560, 2147483648
    %v573 = vor.u32 1.1754944e-38, %v572
    %v574 = vsel %vm571, %v573, %v569
    %v575 = vmul.f32 1.0, %v574
    %v576 = vtanh.pop %v556
    %v577 = vmul.f32 %v575, %v500
    %579 = vrot.lane.b32.xlu0 %v576, 64
    %v580 = vpop.permute.xlu0 %579
    %v582 = vmul.f32 %v575, %v580
    %584 = vrot.lane.b32.xlu0 %v582, 32
    %v585 = vpop.permute.xlu0 %584
    %v587 = vadd.f32 %v577, %v585
    %v588 = vtanh.pop %v587
    %590 = vrot.lane.b32.xlu0 %v588, 64
    %v591 = vpop.permute.xlu0 %590
    %v593 = vmul.f32 %v575, %v591
    %595 = vrot.lane.b32.xlu0 %v593, 32
    %v596 = vpop.permute.xlu0 %595
    %v598 = vrot.slane %v593, 2
    %599 = vrot.lane.b32.xlu0 %v598, 64
    %v600 = vpop.permute.xlu0 %599
    %v602 = vsel %vm196, %v596, %v600
    %v603 = vld [vmem:[#allocation2 + $0x10] sm:$0xc]
    %v604 = vld [vmem:[#allocation2 + $0x8] sm:$0x30]
    %v605 = vpack.c.bf16 %v602, %v602
    %v607 = vsel %vm241, %v605, 0
    %609 = vmatpush.bf16.msra.mxu0 0
    %610 = vmatpush.bf16.msra.mxu0 0
    %611 = vmatpush.bf16.msra.mxu0 0
    %612 = vmatpush.bf16.msra.mxu0 0
    %613 = vmatpush.bf16.msra.mxu0 %v231
    %614 = vmatpush.bf16.msra.mxu0 %v229
    %615 = vmatpush.bf16.msra.mxu0 %v227
    %616 = vmatpush.bf16.msra.mxu0 %v225
    %617 = vmatmul.bf16.gmra.mxu0 %v607
    %v618 = vpop.f32.mrf.mxu0
    %v619 = vadd.f32 0.0, %v618
    %v620 = vpop.f32.mrf.mxu0
    %621 = vdwg.mxu0
    %622 = vmatpush.bf16.msra.mxu0 0
    %623 = vmatpush.bf16.msra.mxu0 0
    %624 = vmatpush.bf16.msra.mxu0 0
    %625 = vmatpush.bf16.msra.mxu0 0
    %626 = vmatpush.bf16.msra.mxu0 %v232
    %627 = vmatpush.bf16.msra.mxu0 %v230
    %628 = vmatpush.bf16.msra.mxu0 %v228
    %629 = vmatpush.bf16.msra.mxu0 %v226
    %630 = vmatmul.bf16.gmra.mxu0 %v607
    %v631 = vpop.f32.mrf.mxu0
    %v632 = vadd.f32 0.0, %v631
    %v633 = vpop.f32.mrf.mxu0
    %634 = vdwg.mxu0
    %v636 = vrot.slane %v619, 6
    %v638 = vadd.f32 %v603, %v636
    %v640 = vrot.slane %v632, 4
    %v642 = vadd.f32 %v604, %v640
    %v644 = vrot.slane %v638, 2
    %v647 = vrot.slane %v642, 2
    %v649 = vsel %vm155, %v644, %v647
    %v650 = vxor.u32 %v649, 2147483648
    %v651 = vmul.f32 %v650, 1.442695
    %v652 = vpow.pop %v651
    %v653 = vadd.f32 %v652, 1.0
    %v654 = vrcp.pop %v653
    %v655 = vmul.f32 %v653, %v654
    %v656 = vsub.f32 1.0, %v655
    %v657 = vmul.f32 %v654, %v656
    %v658 = vadd.f32 %v654, %v657
    %vm659 = vweird.f32 %v653
    %vm660 = vweird.f32 %v654
    %vm661 = vmor %vm659, %vm660
    %v662 = vsel %vm661, %v654, %v658
    %v663 = vand.u32 2147483647, %v653
    %vm664 = vcmp.eq.f32.partialorder %v663, 8.507059e+37
    %v665 = vand.u32 %v653, 2147483648
    %v666 = vor.u32 1.1754944e-38, %v665
    %v667 = vsel %vm664, %v666, %v662
    %v668 = vmul.f32 1.0, %v667
    %v669 = vtanh.pop %v649
    %v670 = vmul.f32 %v668, %v587
    %672 = vrot.lane.b32.xlu0 %v669, 64
    %v673 = vpop.permute.xlu0 %672
    %v675 = vmul.f32 %v668, %v673
    %677 = vrot.lane.b32.xlu0 %v675, 32
    %v678 = vpop.permute.xlu0 %677
    %v680 = vadd.f32 %v670, %v678
    %v681 = vtanh.pop %v680
    %683 = vrot.lane.b32.xlu0 %v681, 64
    %v684 = vpop.permute.xlu0 %683
    %v686 = vmul.f32 %v668, %v684
    %688 = vrot.lane.b32.xlu0 %v686, 32
    %v689 = vpop.permute.xlu0 %688
    %v691 = vrot.slane %v686, 2
    %692 = vrot.lane.b32.xlu0 %v691, 64
    %v693 = vpop.permute.xlu0 %692
    %v695 = vsel %vm196, %v689, %v693
    %v696 = vld [vmem:[#allocation2 + $0x10] sm:$0x30]
    %v697 = vld [vmem:[#allocation2 + $0x8] sm:$0xc]
    %v698 = vpack.c.bf16 %v695, %v695
    %v700 = vsel %vm241, %v698, 0
    %702 = vmatpush.bf16.msra.mxu0 0
    %703 = vmatpush.bf16.msra.mxu0 0
    %704 = vmatpush.bf16.msra.mxu0 0
    %705 = vmatpush.bf16.msra.mxu0 0
    %706 = vmatpush.bf16.msra.mxu0 %v231
    %707 = vmatpush.bf16.msra.mxu0 %v229
    %708 = vmatpush.bf16.msra.mxu0 %v227
    %709 = vmatpush.bf16.msra.mxu0 %v225
    %710 = vmatmul.bf16.gmra.mxu0 %v700
    %v711 = vpop.f32.mrf.mxu0
    %v712 = vadd.f32 0.0, %v711
    %v713 = vpop.f32.mrf.mxu0
    %714 = vdwg.mxu0
    %715 = vmatpush.bf16.msra.mxu0 0
    %716 = vmatpush.bf16.msra.mxu0 0
    %717 = vmatpush.bf16.msra.mxu0 0
    %718 = vmatpush.bf16.msra.mxu0 0
    %719 = vmatpush.bf16.msra.mxu0 %v232
    %720 = vmatpush.bf16.msra.mxu0 %v230
    %721 = vmatpush.bf16.msra.mxu0 %v228
    %722 = vmatpush.bf16.msra.mxu0 %v226
    %723 = vmatmul.bf16.gmra.mxu0 %v700
    %v724 = vpop.f32.mrf.mxu0
    %v725 = vadd.f32 0.0, %v724
    %v726 = vpop.f32.mrf.mxu0
    %727 = vdwg.mxu0
    %v729 = vrot.slane %v712, 4
    %v731 = vadd.f32 %v696, %v729
    %v733 = vrot.slane %v725, 6
    %v735 = vadd.f32 %v697, %v733
    %v737 = vrot.slane %v731, 4
    %v739 = vsel %vm155, %v737, %v735
    %v740 = vxor.u32 %v739, 2147483648
    %v741 = vmul.f32 %v740, 1.442695
    %v742 = vpow.pop %v741
    %v743 = vadd.f32 %v742, 1.0
    %v744 = vrcp.pop %v743
    %v745 = vmul.f32 %v743, %v744
    %v746 = vsub.f32 1.0, %v745
    %v747 = vmul.f32 %v744, %v746
    %v748 = vadd.f32 %v744, %v747
    %vm749 = vweird.f32 %v743
    %vm750 = vweird.f32 %v744
    %vm751 = vmor %vm749, %vm750
    %v752 = vsel %vm751, %v744, %v748
    %v753 = vand.u32 2147483647, %v743
    %vm754 = vcmp.eq.f32.partialorder %v753, 8.507059e+37
    %v755 = vand.u32 %v743, 2147483648
    %v756 = vor.u32 1.1754944e-38, %v755
    %v757 = vsel %vm754, %v756, %v752
    %v758 = vmul.f32 1.0, %v757
    %v759 = vtanh.pop %v739
    %v760 = vmul.f32 %v758, %v680
    %762 = vrot.lane.b32.xlu0 %v759, 64
    %v763 = vpop.permute.xlu0 %762
    %v765 = vmul.f32 %v758, %v763
    %767 = vrot.lane.b32.xlu0 %v765, 32
    %v768 = vpop.permute.xlu0 %767
    %v770 = vadd.f32 %v760, %v768
    %v771 = vtanh.pop %v770
    %773 = vrot.lane.b32.xlu0 %v771, 64
    %v774 = vpop.permute.xlu0 %773
    %v776 = vmul.f32 %v758, %v774
    %778 = vrot.lane.b32.xlu0 %v776, 32
    %v779 = vpop.permute.xlu0 %778
    %v781 = vrot.slane %v776, 2
    %782 = vrot.lane.b32.xlu0 %v781, 64
    %v783 = vpop.permute.xlu0 %782
    %v785 = vsel %vm196, %v779, %v783
    %v786 = vld [vmem:[#allocation2 + $0x10] sm:$0xc0]
    %v787 = vld [vmem:[#allocation2 + $0x8] sm:$0x3]
    %v788 = vpack.c.bf16 %v785, %v785
    %v790 = vsel %vm241, %v788, 0
    %792 = vmatpush.bf16.msra.mxu0 0
    %793 = vmatpush.bf16.msra.mxu0 0
    %794 = vmatpush.bf16.msra.mxu0 0
    %795 = vmatpush.bf16.msra.mxu0 0
    %796 = vmatpush.bf16.msra.mxu0 %v231
    %797 = vmatpush.bf16.msra.mxu0 %v229
    %798 = vmatpush.bf16.msra.mxu0 %v227
    %799 = vmatpush.bf16.msra.mxu0 %v225
    %800 = vmatmul.bf16.gmra.mxu0 %v790
    %v801 = vpop.f32.mrf.mxu0
    %v802 = vadd.f32 0.0, %v801
    %v803 = vpop.f32.mrf.mxu0
    %804 = vdwg.mxu0
    %805 = vmatpush.bf16.msra.mxu0 0
    %806 = vmatpush.bf16.msra.mxu0 0
    %807 = vmatpush.bf16.msra.mxu0 0
    %808 = vmatpush.bf16.msra.mxu0 0
    %809 = vmatpush.bf16.msra.mxu0 %v232
    %810 = vmatpush.bf16.msra.mxu0 %v230
    %811 = vmatpush.bf16.msra.mxu0 %v228
    %812 = vmatpush.bf16.msra.mxu0 %v226
    %813 = vmatmul.bf16.gmra.mxu0 %v790
    %v814 = vpop.f32.mrf.mxu0
    %v815 = vadd.f32 0.0, %v814
    %v816 = vpop.f32.mrf.mxu0
    %817 = vdwg.mxu0
    %v819 = vrot.slane %v802, 2
    %v821 = vadd.f32 %v786, %v819
    %v822 = vadd.f32 %v787, %v815
    %v824 = vrot.slane %v821, 6
    %v827 = vrot.slane %v822, 6
    %v829 = vsel %vm155, %v824, %v827
    %v830 = vxor.u32 %v829, 2147483648
    %v831 = vmul.f32 %v830, 1.442695
    %v832 = vpow.pop %v831
    %v833 = vadd.f32 %v832, 1.0
    %v834 = vrcp.pop %v833
    %v835 = vmul.f32 %v833, %v834
    %v836 = vsub.f32 1.0, %v835
    %v837 = vmul.f32 %v834, %v836
    %v838 = vadd.f32 %v834, %v837
    %vm839 = vweird.f32 %v833
    %vm840 = vweird.f32 %v834
    %vm841 = vmor %vm839, %vm840
    %v842 = vsel %vm841, %v834, %v838
    %v843 = vand.u32 2147483647, %v833
    %vm844 = vcmp.eq.f32.partialorder %v843, 8.507059e+37
    %v845 = vand.u32 %v833, 2147483648
    %v846 = vor.u32 1.1754944e-38, %v845
    %v847 = vsel %vm844, %v846, %v842
    %v848 = vmul.f32 1.0, %v847
    %v849 = vtanh.pop %v829
    %v850 = vmul.f32 %v848, %v770
    %852 = vrot.lane.b32.xlu0 %v849, 64
    %v853 = vpop.permute.xlu0 %852
    %v855 = vmul.f32 %v848, %v853
    %857 = vrot.lane.b32.xlu0 %v855, 32
    %v858 = vpop.permute.xlu0 %857
    %v860 = vadd.f32 %v850, %v858
    %v861 = vtanh.pop %v860
    %863 = vrot.lane.b32.xlu0 %v861, 64
    %v864 = vpop.permute.xlu0 %863
    %v866 = vmul.f32 %v848, %v864
    %v867 = vrot.slane %v326, 6
    %v869 = vrot.slane %v416, 4
    %v872 = vrot.slane %v686, 6
    %v874 = vrot.slane %v776, 4
    %v877 = vrot.slane %v866, 2
    %v879 = vsel %vm155, %v187, %v867
    %vm880 = vcmask 1043456
    %v881 = vsel %vm880, %v879, %v869
    %vm882 = vcmask 1045504
    %v883 = vsel %vm882, %v881, %v511
    %v884 = vsel %vm155, %v593, %v872
    %v885 = vsel %vm880, %v884, %v874
    %v886 = vsel %vm882, %v885, %v877
    %v887 = vrot.slane %v593, 4
    %v889 = vrot.slane %v187, 4
    %v891 = vsel %vm155, %v877, %v776
    %v892 = vsel %vm880, %v891, %v872
    %v893 = vsel %vm882, %v892, %v887
    %v894 = vsel %vm155, %v511, %v416
    %v895 = vsel %vm880, %v894, %v867
    %v896 = vsel %vm882, %v895, %v889
    %899 = vrot.lane.b32.xlu0 %v883, 32
    %v900 = vpop.permute.xlu0 %899
    %901 = vrot.lane.b32.xlu0 %v886, 32
    %v902 = vpop.permute.xlu0 %901
    %907 = vrot.lane.b32.xlu0 %v893, 64
    %v908 = vpop.permute.xlu0 %907
    %909 = vrot.lane.b32.xlu0 %v896, 64
    %v910 = vpop.permute.xlu0 %909
    %v913 = vsel %vm196, %v900, %v908
    %v914 = vsel %vm196, %v902, %v910
    %v915 = vpack.c.bf16 %v914, %v913
    %v916 = vld [vmem:[#allocation6] sm:$0xff]
    %v917 = vld [vmem:[#allocation6 + $0x8] sm:$0xff]
    %v918 = vld [vmem:[#allocation6 + $0x10] sm:$0xff]
    %v919 = vld [vmem:[#allocation6 + $0x18] sm:$0xff]
    %v920 = vld [vmem:[#allocation6 + $0x20] sm:$0xff]
    %v921 = vld [vmem:[#allocation6 + $0x28] sm:$0xff]
    %v922 = vld [vmem:[#allocation6 + $0x30] sm:$0xff]
    %v923 = vld [vmem:[#allocation6 + $0x38] sm:$0xff]
    %v924 = vld [vmem:[%s6] sm:$0x3]
    %v926 = vperm.slane %v924, 0
    %v927 = vperm.slane %v924, 1
    %v938 = vunpack.c.l.b16 %v916
    %v939 = vunpack.c.h.b16 %v916
    %v940 = vunpack.c.l.b16 %v917
    %v941 = vunpack.c.h.b16 %v917
    %v942 = vunpack.c.l.b16 %v918
    %v943 = vunpack.c.h.b16 %v918
    %v944 = vunpack.c.l.b16 %v919
    %v945 = vunpack.c.h.b16 %v919
    %v946 = vunpack.c.l.b16 %v920
    %v947 = vunpack.c.h.b16 %v920
    %v948 = vunpack.c.l.b16 %v921
    %v949 = vunpack.c.h.b16 %v921
    %v950 = vunpack.c.l.b16 %v922
    %v951 = vunpack.c.h.b16 %v922
    %v952 = vunpack.c.l.b16 %v923
    %v953 = vunpack.c.h.b16 %v923
    %v954 = vpack.c.b16 %v940, %v938
    %v955 = vpack.c.b16 %v941, %v939
    %v956 = vpack.c.b16 %v944, %v942
    %v957 = vpack.c.b16 %v945, %v943
    %v958 = vpack.c.b16 %v948, %v946
    %v959 = vpack.c.b16 %v949, %v947
    %v960 = vpack.c.b16 %v952, %v950
    %v961 = vpack.c.b16 %v953, %v951
    %v971 = vsel %vm241, %v915, 0
    %973 = vmatpush.bf16.msra.mxu0 0
    %974 = vmatpush.bf16.msra.mxu0 0
    %975 = vmatpush.bf16.msra.mxu0 0
    %976 = vmatpush.bf16.msra.mxu0 0
    %977 = vmatpush.bf16.msra.mxu0 %v960
    %978 = vmatpush.bf16.msra.mxu0 %v958
    %979 = vmatpush.bf16.msra.mxu0 %v956
    %980 = vmatpush.bf16.msra.mxu0 %v954
    %981 = vmatmul.bf16.gmra.mxu0 %v971
    %v982 = vpop.f32.mrf.mxu0
    %v983 = vadd.f32 %v926, %v982
    %v984 = vpop.f32.mrf.mxu0
    %v985 = vadd.f32 %v926, %v984
    %986 = vdwg.mxu0
    %987 = vmatpush.bf16.msra.mxu0 0
    %988 = vmatpush.bf16.msra.mxu0 0
    %989 = vmatpush.bf16.msra.mxu0 0
    %990 = vmatpush.bf16.msra.mxu0 0
    %991 = vmatpush.bf16.msra.mxu0 %v961
    %992 = vmatpush.bf16.msra.mxu0 %v959
    %993 = vmatpush.bf16.msra.mxu0 %v957
    %994 = vmatpush.bf16.msra.mxu0 %v955
    %995 = vmatmul.bf16.gmra.mxu0 %v971
    %v996 = vpop.f32.mrf.mxu0
    %v997 = vadd.f32 %v927, %v996
    %v998 = vpop.f32.mrf.mxu0
    %v999 = vadd.f32 %v927, %v998
    %1000 = vdwg.mxu0
    %1001 = vst [vmem:[#allocation2] sm:$0xff] %v983
    %1002 = vst [vmem:[#allocation2 + $0x8] sm:$0xff] %v997
    %1003 = vst [vmem:[#allocation2 + $0x10] sm:$0xff] %v985
    %1004 = vst [vmem:[#allocation2 + $0x18] sm:$0xff] %v999
    %v1005 = vld [vmem:[#allocation8] sm:$0xff]
    %v1006 = vld [vmem:[#allocation8 + $0x8] sm:$0xff]
    %v1007 = vld [vmem:[#allocation8 + $0x10] sm:$0xff]
    %v1008 = vld [vmem:[#allocation8 + $0x18] sm:$0xff]
    %v1009 = vld [vmem:[#allocation8 + $0x20] sm:$0xff]
    %v1010 = vld [vmem:[#allocation8 + $0x28] sm:$0xff]
    %v1011 = vld [vmem:[#allocation8 + $0x30] sm:$0xff]
    %v1012 = vld [vmem:[#allocation8 + $0x38] sm:$0xff]
    %v1013 = vld [vmem:[#allocation2] sm:$0x3]
    %v1014 = vld [vmem:[#allocation2 + $0x18] sm:$0xc0]
    %v1016 = vrot.slane %v1014, 4
    %v1018 = vsel %vm155, %v1013, %v1016
    %v1019 = vxor.u32 %v1018, 2147483648
    %v1020 = vmul.f32 %v1019, 1.442695
    %v1021 = vpow.pop %v1020
    %v1022 = vadd.f32 %v1021, 1.0
    %v1023 = vrcp.pop %v1022
    %v1024 = vmul.f32 %v1022, %v1023
    %v1025 = vsub.f32 1.0, %v1024
    %v1026 = vmul.f32 %v1023, %v1025
    %v1027 = vadd.f32 %v1023, %v1026
    %vm1028 = vweird.f32 %v1022
    %vm1029 = vweird.f32 %v1023
    %vm1030 = vmor %vm1028, %vm1029
    %v1031 = vsel %vm1030, %v1023, %v1027
    %v1032 = vand.u32 2147483647, %v1022
    %vm1033 = vcmp.eq.f32.partialorder %v1032, 8.507059e+37
    %v1034 = vand.u32 %v1022, 2147483648
    %v1035 = vor.u32 1.1754944e-38, %v1034
    %v1036 = vsel %vm1033, %v1035, %v1031
    %v1037 = vmul.f32 1.0, %v1036
    %v1038 = vtanh.pop %v1018
    %1040 = vrot.lane.b32.xlu0 %v1038, 64
    %v1041 = vpop.permute.xlu0 %1040
    %v1043 = vmul.f32 %v1037, %v1041
    %v1044 = vtanh.pop %v1043
    %1046 = vrot.lane.b32.xlu0 %v1044, 96
    %v1047 = vpop.permute.xlu0 %1046
    %v1049 = vmul.f32 %v1037, %v1047
    %1051 = vrot.lane.b32.xlu0 %v1049, 32
    %v1052 = vpop.permute.xlu0 %1051
    %v1054 = vrot.slane %v1049, 2
    %1055 = vrot.lane.b32.xlu0 %v1054, 64
    %v1056 = vpop.permute.xlu0 %1055
    %v1058 = vsel %vm196, %v1052, %v1056
    %v1059 = vld [vmem:[#allocation2] sm:$0xc]
    %v1060 = vld [vmem:[#allocation2 + $0x18] sm:$0x30]
    %v1061 = vpack.c.bf16 %v1058, %v1058
    %v1070 = vunpack.c.l.b16 %v1005
    %v1071 = vunpack.c.h.b16 %v1005
    %v1072 = vunpack.c.l.b16 %v1006
    %v1073 = vunpack.c.h.b16 %v1006
    %v1074 = vunpack.c.l.b16 %v1007
    %v1075 = vunpack.c.h.b16 %v1007
    %v1076 = vunpack.c.l.b16 %v1008
    %v1077 = vunpack.c.h.b16 %v1008
    %v1078 = vunpack.c.l.b16 %v1009
    %v1079 = vunpack.c.h.b16 %v1009
    %v1080 = vunpack.c.l.b16 %v1010
    %v1081 = vunpack.c.h.b16 %v1010
    %v1082 = vunpack.c.l.b16 %v1011
    %v1083 = vunpack.c.h.b16 %v1011
    %v1084 = vunpack.c.l.b16 %v1012
    %v1085 = vunpack.c.h.b16 %v1012
    %v1086 = vpack.c.b16 %v1072, %v1070
    %v1087 = vpack.c.b16 %v1073, %v1071
    %v1088 = vpack.c.b16 %v1076, %v1074
    %v1089 = vpack.c.b16 %v1077, %v1075
    %v1090 = vpack.c.b16 %v1080, %v1078
    %v1091 = vpack.c.b16 %v1081, %v1079
    %v1092 = vpack.c.b16 %v1084, %v1082
    %v1093 = vpack.c.b16 %v1085, %v1083
    %v1103 = vsel %vm241, %v1061, 0
    %1105 = vmatpush.bf16.msra.mxu0 0
    %1106 = vmatpush.bf16.msra.mxu0 0
    %1107 = vmatpush.bf16.msra.mxu0 0
    %1108 = vmatpush.bf16.msra.mxu0 0
    %1109 = vmatpush.bf16.msra.mxu0 %v1092
    %1110 = vmatpush.bf16.msra.mxu0 %v1090
    %1111 = vmatpush.bf16.msra.mxu0 %v1088
    %1112 = vmatpush.bf16.msra.mxu0 %v1086
    %1113 = vmatmul.bf16.gmra.mxu0 %v1103
    %v1114 = vpop.f32.mrf.mxu0
    %v1115 = vadd.f32 0.0, %v1114
    %v1116 = vpop.f32.mrf.mxu0
    %1117 = vdwg.mxu0
    %1118 = vmatpush.bf16.msra.mxu0 0
    %1119 = vmatpush.bf16.msra.mxu0 0
    %1120 = vmatpush.bf16.msra.mxu0 0
    %1121 = vmatpush.bf16.msra.mxu0 0
    %1122 = vmatpush.bf16.msra.mxu0 %v1093
    %1123 = vmatpush.bf16.msra.mxu0 %v1091
    %1124 = vmatpush.bf16.msra.mxu0 %v1089
    %1125 = vmatpush.bf16.msra.mxu0 %v1087
    %1126 = vmatmul.bf16.gmra.mxu0 %v1103
    %v1127 = vpop.f32.mrf.mxu0
    %v1128 = vadd.f32 0.0, %v1127
    %v1129 = vpop.f32.mrf.mxu0
    %1130 = vdwg.mxu0
    %v1132 = vrot.slane %v1115, 6
    %v1134 = vadd.f32 %v1059, %v1132
    %v1136 = vrot.slane %v1128, 4
    %v1138 = vadd.f32 %v1060, %v1136
    %v1140 = vrot.slane %v1134, 2
    %v1143 = vrot.slane %v1138, 2
    %v1145 = vsel %vm155, %v1140, %v1143
    %v1146 = vxor.u32 %v1145, 2147483648
    %v1147 = vmul.f32 %v1146, 1.442695
    %v1148 = vpow.pop %v1147
    %v1149 = vadd.f32 %v1148, 1.0
    %v1150 = vrcp.pop %v1149
    %v1151 = vmul.f32 %v1149, %v1150
    %v1152 = vsub.f32 1.0, %v1151
    %v1153 = vmul.f32 %v1150, %v1152
    %v1154 = vadd.f32 %v1150, %v1153
    %vm1155 = vweird.f32 %v1149
    %vm1156 = vweird.f32 %v1150
    %vm1157 = vmor %vm1155, %vm1156
    %v1158 = vsel %vm1157, %v1150, %v1154
    %v1159 = vand.u32 2147483647, %v1149
    %vm1160 = vcmp.eq.f32.partialorder %v1159, 8.507059e+37
    %v1161 = vand.u32 %v1149, 2147483648
    %v1162 = vor.u32 1.1754944e-38, %v1161
    %v1163 = vsel %vm1160, %v1162, %v1158
    %v1164 = vmul.f32 1.0, %v1163
    %v1165 = vtanh.pop %v1145
    %1167 = vrot.lane.b32.xlu0 %v1043, 32
    %v1168 = vpop.permute.xlu0 %1167
    %v1170 = vmul.f32 %v1164, %v1168
    %1172 = vrot.lane.b32.xlu0 %v1165, 64
    %v1173 = vpop.permute.xlu0 %1172
    %v1175 = vmul.f32 %v1164, %v1173
    %1177 = vrot.lane.b32.xlu0 %v1175, 32
    %v1178 = vpop.permute.xlu0 %1177
    %v1180 = vadd.f32 %v1170, %v1178
    %v1181 = vtanh.pop %v1180
    %1183 = vrot.lane.b32.xlu0 %v1181, 64
    %v1184 = vpop.permute.xlu0 %1183
    %v1186 = vmul.f32 %v1164, %v1184
    %1188 = vrot.lane.b32.xlu0 %v1186, 32
    %v1189 = vpop.permute.xlu0 %1188
    %v1191 = vrot.slane %v1186, 2
    %1192 = vrot.lane.b32.xlu0 %v1191, 64
    %v1193 = vpop.permute.xlu0 %1192
    %v1195 = vsel %vm196, %v1189, %v1193
    %v1196 = vld [vmem:[#allocation2] sm:$0x30]
    %v1197 = vld [vmem:[#allocation2 + $0x18] sm:$0xc]
    %v1198 = vpack.c.bf16 %v1195, %v1195
    %v1200 = vsel %vm241, %v1198, 0
    %1202 = vmatpush.bf16.msra.mxu0 0
    %1203 = vmatpush.bf16.msra.mxu0 0
    %1204 = vmatpush.bf16.msra.mxu0 0
    %1205 = vmatpush.bf16.msra.mxu0 0
    %1206 = vmatpush.bf16.msra.mxu0 %v1092
    %1207 = vmatpush.bf16.msra.mxu0 %v1090
    %1208 = vmatpush.bf16.msra.mxu0 %v1088
    %1209 = vmatpush.bf16.msra.mxu0 %v1086
    %1210 = vmatmul.bf16.gmra.mxu0 %v1200
    %v1211 = vpop.f32.mrf.mxu0
    %v1212 = vadd.f32 0.0, %v1211
    %v1213 = vpop.f32.mrf.mxu0
    %1214 = vdwg.mxu0
    %1215 = vmatpush.bf16.msra.mxu0 0
    %1216 = vmatpush.bf16.msra.mxu0 0
    %1217 = vmatpush.bf16.msra.mxu0 0
    %1218 = vmatpush.bf16.msra.mxu0 0
    %1219 = vmatpush.bf16.msra.mxu0 %v1093
    %1220 = vmatpush.bf16.msra.mxu0 %v1091
    %1221 = vmatpush.bf16.msra.mxu0 %v1089
    %1222 = vmatpush.bf16.msra.mxu0 %v1087
    %1223 = vmatmul.bf16.gmra.mxu0 %v1200
    %v1224 = vpop.f32.mrf.mxu0
    %v1225 = vadd.f32 0.0, %v1224
    %v1226 = vpop.f32.mrf.mxu0
    %1227 = vdwg.mxu0
    %v1229 = vrot.slane %v1212, 4
    %v1231 = vadd.f32 %v1196, %v1229
    %v1233 = vrot.slane %v1225, 6
    %v1235 = vadd.f32 %v1197, %v1233
    %v1237 = vrot.slane %v1231, 4
    %v1239 = vsel %vm155, %v1237, %v1235
    %v1240 = vxor.u32 %v1239, 2147483648
    %v1241 = vmul.f32 %v1240, 1.442695
    %v1242 = vpow.pop %v1241
    %v1243 = vadd.f32 %v1242, 1.0
    %v1244 = vrcp.pop %v1243
    %v1245 = vmul.f32 %v1243, %v1244
    %v1246 = vsub.f32 1.0, %v1245
    %v1247 = vmul.f32 %v1244, %v1246
    %v1248 = vadd.f32 %v1244, %v1247
    %vm1249 = vweird.f32 %v1243
    %vm1250 = vweird.f32 %v1244
    %vm1251 = vmor %vm1249, %vm1250
    %v1252 = vsel %vm1251, %v1244, %v1248
    %v1253 = vand.u32 2147483647, %v1243
    %vm1254 = vcmp.eq.f32.partialorder %v1253, 8.507059e+37
    %v1255 = vand.u32 %v1243, 2147483648
    %v1256 = vor.u32 1.1754944e-38, %v1255
    %v1257 = vsel %vm1254, %v1256, %v1252
    %v1258 = vmul.f32 1.0, %v1257
    %v1259 = vtanh.pop %v1239
    %v1260 = vmul.f32 %v1258, %v1180
    %1262 = vrot.lane.b32.xlu0 %v1259, 64
    %v1263 = vpop.permute.xlu0 %1262
    %v1265 = vmul.f32 %v1258, %v1263
    %1267 = vrot.lane.b32.xlu0 %v1265, 32
    %v1268 = vpop.permute.xlu0 %1267
    %v1270 = vadd.f32 %v1260, %v1268
    %v1271 = vtanh.pop %v1270
    %1273 = vrot.lane.b32.xlu0 %v1271, 64
    %v1274 = vpop.permute.xlu0 %1273
    %v1276 = vmul.f32 %v1258, %v1274
    %1278 = vrot.lane.b32.xlu0 %v1276, 32
    %v1279 = vpop.permute.xlu0 %1278
    %v1281 = vrot.slane %v1276, 2
    %1282 = vrot.lane.b32.xlu0 %v1281, 64
    %v1283 = vpop.permute.xlu0 %1282
    %v1285 = vsel %vm196, %v1279, %v1283
    %v1286 = vld [vmem:[#allocation2] sm:$0xc0]
    %v1287 = vld [vmem:[#allocation2 + $0x18] sm:$0x3]
    %v1288 = vpack.c.bf16 %v1285, %v1285
    %v1290 = vsel %vm241, %v1288, 0
    %1292 = vmatpush.bf16.msra.mxu0 0
    %1293 = vmatpush.bf16.msra.mxu0 0
    %1294 = vmatpush.bf16.msra.mxu0 0
    %1295 = vmatpush.bf16.msra.mxu0 0
    %1296 = vmatpush.bf16.msra.mxu0 %v1092
    %1297 = vmatpush.bf16.msra.mxu0 %v1090
    %1298 = vmatpush.bf16.msra.mxu0 %v1088
    %1299 = vmatpush.bf16.msra.mxu0 %v1086
    %1300 = vmatmul.bf16.gmra.mxu0 %v1290
    %v1301 = vpop.f32.mrf.mxu0
    %v1302 = vadd.f32 0.0, %v1301
    %v1303 = vpop.f32.mrf.mxu0
    %1304 = vdwg.mxu0
    %1305 = vmatpush.bf16.msra.mxu0 0
    %1306 = vmatpush.bf16.msra.mxu0 0
    %1307 = vmatpush.bf16.msra.mxu0 0
    %1308 = vmatpush.bf16.msra.mxu0 0
    %1309 = vmatpush.bf16.msra.mxu0 %v1093
    %1310 = vmatpush.bf16.msra.mxu0 %v1091
    %1311 = vmatpush.bf16.msra.mxu0 %v1089
    %1312 = vmatpush.bf16.msra.mxu0 %v1087
    %1313 = vmatmul.bf16.gmra.mxu0 %v1290
    %v1314 = vpop.f32.mrf.mxu0
    %v1315 = vadd.f32 0.0, %v1314
    %v1316 = vpop.f32.mrf.mxu0
    %1317 = vdwg.mxu0
    %v1319 = vrot.slane %v1302, 2
    %v1321 = vadd.f32 %v1286, %v1319
    %v1322 = vadd.f32 %v1287, %v1315
    %v1324 = vrot.slane %v1321, 6
    %v1327 = vrot.slane %v1322, 6
    %v1329 = vsel %vm155, %v1324, %v1327
    %v1330 = vxor.u32 %v1329, 2147483648
    %v1331 = vmul.f32 %v1330, 1.442695
    %v1332 = vpow.pop %v1331
    %v1333 = vadd.f32 %v1332, 1.0
    %v1334 = vrcp.pop %v1333
    %v1335 = vmul.f32 %v1333, %v1334
    %v1336 = vsub.f32 1.0, %v1335
    %v1337 = vmul.f32 %v1334, %v1336
    %v1338 = vadd.f32 %v1334, %v1337
    %vm1339 = vweird.f32 %v1333
    %vm1340 = vweird.f32 %v1334
    %vm1341 = vmor %vm1339, %vm1340
    %v1342 = vsel %vm1341, %v1334, %v1338
    %v1343 = vand.u32 2147483647, %v1333
    %vm1344 = vcmp.eq.f32.partialorder %v1343, 8.507059e+37
    %v1345 = vand.u32 %v1333, 2147483648
    %v1346 = vor.u32 1.1754944e-38, %v1345
    %v1347 = vsel %vm1344, %v1346, %v1342
    %v1348 = vmul.f32 1.0, %v1347
    %v1349 = vtanh.pop %v1329
    %v1350 = vmul.f32 %v1348, %v1270
    %1352 = vrot.lane.b32.xlu0 %v1349, 64
    %v1353 = vpop.permute.xlu0 %1352
    %v1355 = vmul.f32 %v1348, %v1353
    %1357 = vrot.lane.b32.xlu0 %v1355, 32
    %v1358 = vpop.permute.xlu0 %1357
    %v1360 = vadd.f32 %v1350, %v1358
    %v1361 = vtanh.pop %v1360
    %1363 = vrot.lane.b32.xlu0 %v1361, 64
    %v1364 = vpop.permute.xlu0 %1363
    %v1366 = vmul.f32 %v1348, %v1364
    %1368 = vrot.lane.b32.xlu0 %v1366, 32
    %v1369 = vpop.permute.xlu0 %1368
    %v1371 = vrot.slane %v1366, 2
    %1372 = vrot.lane.b32.xlu0 %v1371, 64
    %v1373 = vpop.permute.xlu0 %1372
    %v1375 = vsel %vm196, %v1369, %v1373
    %v1376 = vld [vmem:[#allocation2 + $0x10] sm:$0x3]
    %v1377 = vld [vmem:[#allocation2 + $0x8] sm:$0xc0]
    %v1378 = vpack.c.bf16 %v1375, %v1375
    %v1380 = vsel %vm241, %v1378, 0
    %1382 = vmatpush.bf16.msra.mxu0 0
    %1383 = vmatpush.bf16.msra.mxu0 0
    %1384 = vmatpush.bf16.msra.mxu0 0
    %1385 = vmatpush.bf16.msra.mxu0 0
    %1386 = vmatpush.bf16.msra.mxu0 %v1092
    %1387 = vmatpush.bf16.msra.mxu0 %v1090
    %1388 = vmatpush.bf16.msra.mxu0 %v1088
    %1389 = vmatpush.bf16.msra.mxu0 %v1086
    %1390 = vmatmul.bf16.gmra.mxu0 %v1380
    %v1391 = vpop.f32.mrf.mxu0
    %v1392 = vadd.f32 0.0, %v1391
    %v1393 = vpop.f32.mrf.mxu0
    %1394 = vdwg.mxu0
    %1395 = vmatpush.bf16.msra.mxu0 0
    %1396 = vmatpush.bf16.msra.mxu0 0
    %1397 = vmatpush.bf16.msra.mxu0 0
    %1398 = vmatpush.bf16.msra.mxu0 0
    %1399 = vmatpush.bf16.msra.mxu0 %v1093
    %1400 = vmatpush.bf16.msra.mxu0 %v1091
    %1401 = vmatpush.bf16.msra.mxu0 %v1089
    %1402 = vmatpush.bf16.msra.mxu0 %v1087
    %1403 = vmatmul.bf16.gmra.mxu0 %v1380
    %v1404 = vpop.f32.mrf.mxu0
    %v1405 = vadd.f32 0.0, %v1404
    %v1406 = vpop.f32.mrf.mxu0
    %1407 = vdwg.mxu0
    %v1408 = vadd.f32 %v1376, %v1392
    %v1410 = vrot.slane %v1405, 2
    %v1412 = vadd.f32 %v1377, %v1410
    %v1414 = vrot.slane %v1412, 4
    %v1416 = vsel %vm155, %v1408, %v1414
    %v1417 = vxor.u32 %v1416, 2147483648
    %v1418 = vmul.f32 %v1417, 1.442695
    %v1419 = vpow.pop %v1418
    %v1420 = vadd.f32 %v1419, 1.0
    %v1421 = vrcp.pop %v1420
    %v1422 = vmul.f32 %v1420, %v1421
    %v1423 = vsub.f32 1.0, %v1422
    %v1424 = vmul.f32 %v1421, %v1423
    %v1425 = vadd.f32 %v1421, %v1424
    %vm1426 = vweird.f32 %v1420
    %vm1427 = vweird.f32 %v1421
    %vm1428 = vmor %vm1426, %vm1427
    %v1429 = vsel %vm1428, %v1421, %v1425
    %v1430 = vand.u32 2147483647, %v1420
    %vm1431 = vcmp.eq.f32.partialorder %v1430, 8.507059e+37
    %v1432 = vand.u32 %v1420, 2147483648
    %v1433 = vor.u32 1.1754944e-38, %v1432
    %v1434 = vsel %vm1431, %v1433, %v1429
    %v1435 = vmul.f32 1.0, %v1434
    %v1436 = vtanh.pop %v1416
    %v1437 = vmul.f32 %v1435, %v1360
    %1439 = vrot.lane.b32.xlu0 %v1436, 64
    %v1440 = vpop.permute.xlu0 %1439
    %v1442 = vmul.f32 %v1435, %v1440
    %1444 = vrot.lane.b32.xlu0 %v1442, 32
    %v1445 = vpop.permute.xlu0 %1444
    %v1447 = vadd.f32 %v1437, %v1445
    %v1448 = vtanh.pop %v1447
    %1450 = vrot.lane.b32.xlu0 %v1448, 64
    %v1451 = vpop.permute.xlu0 %1450
    %v1453 = vmul.f32 %v1435, %v1451
    %1455 = vrot.lane.b32.xlu0 %v1453, 32
    %v1456 = vpop.permute.xlu0 %1455
    %v1458 = vrot.slane %v1453, 2
    %1459 = vrot.lane.b32.xlu0 %v1458, 64
    %v1460 = vpop.permute.xlu0 %1459
    %v1462 = vsel %vm196, %v1456, %v1460
    %v1463 = vld [vmem:[#allocation2 + $0x10] sm:$0xc]
    %v1464 = vld [vmem:[#allocation2 + $0x8] sm:$0x30]
    %v1465 = vpack.c.bf16 %v1462, %v1462
    %v1467 = vsel %vm241, %v1465, 0
    %1469 = vmatpush.bf16.msra.mxu0 0
    %1470 = vmatpush.bf16.msra.mxu0 0
    %1471 = vmatpush.bf16.msra.mxu0 0
    %1472 = vmatpush.bf16.msra.mxu0 0
    %1473 = vmatpush.bf16.msra.mxu0 %v1092
    %1474 = vmatpush.bf16.msra.mxu0 %v1090
    %1475 = vmatpush.bf16.msra.mxu0 %v1088
    %1476 = vmatpush.bf16.msra.mxu0 %v1086
    %1477 = vmatmul.bf16.gmra.mxu0 %v1467
    %v1478 = vpop.f32.mrf.mxu0
    %v1479 = vadd.f32 0.0, %v1478
    %v1480 = vpop.f32.mrf.mxu0
    %1481 = vdwg.mxu0
    %1482 = vmatpush.bf16.msra.mxu0 0
    %1483 = vmatpush.bf16.msra.mxu0 0
    %1484 = vmatpush.bf16.msra.mxu0 0
    %1485 = vmatpush.bf16.msra.mxu0 0
    %1486 = vmatpush.bf16.msra.mxu0 %v1093
    %1487 = vmatpush.bf16.msra.mxu0 %v1091
    %1488 = vmatpush.bf16.msra.mxu0 %v1089
    %1489 = vmatpush.bf16.msra.mxu0 %v1087
    %1490 = vmatmul.bf16.gmra.mxu0 %v1467
    %v1491 = vpop.f32.mrf.mxu0
    %v1492 = vadd.f32 0.0, %v1491
    %v1493 = vpop.f32.mrf.mxu0
    %1494 = vdwg.mxu0
    %v1496 = vrot.slane %v1479, 6
    %v1498 = vadd.f32 %v1463, %v1496
    %v1500 = vrot.slane %v1492, 4
    %v1502 = vadd.f32 %v1464, %v1500
    %v1504 = vrot.slane %v1498, 2
    %v1507 = vrot.slane %v1502, 2
    %v1509 = vsel %vm155, %v1504, %v1507
    %v1510 = vxor.u32 %v1509, 2147483648
    %v1511 = vmul.f32 %v1510, 1.442695
    %v1512 = vpow.pop %v1511
    %v1513 = vadd.f32 %v1512, 1.0
    %v1514 = vrcp.pop %v1513
    %v1515 = vmul.f32 %v1513, %v1514
    %v1516 = vsub.f32 1.0, %v1515
    %v1517 = vmul.f32 %v1514, %v1516
    %v1518 = vadd.f32 %v1514, %v1517
    %vm1519 = vweird.f32 %v1513
    %vm1520 = vweird.f32 %v1514
    %vm1521 = vmor %vm1519, %vm1520
    %v1522 = vsel %vm1521, %v1514, %v1518
    %v1523 = vand.u32 2147483647, %v1513
    %vm1524 = vcmp.eq.f32.partialorder %v1523, 8.507059e+37
    %v1525 = vand.u32 %v1513, 2147483648
    %v1526 = vor.u32 1.1754944e-38, %v1525
    %v1527 = vsel %vm1524, %v1526, %v1522
    %v1528 = vmul.f32 1.0, %v1527
    %v1529 = vtanh.pop %v1509
    %v1530 = vmul.f32 %v1528, %v1447
    %1532 = vrot.lane.b32.xlu0 %v1529, 64
    %v1533 = vpop.permute.xlu0 %1532
    %v1535 = vmul.f32 %v1528, %v1533
    %1537 = vrot.lane.b32.xlu0 %v1535, 32
    %v1538 = vpop.permute.xlu0 %1537
    %v1540 = vadd.f32 %v1530, %v1538
    %v1541 = vtanh.pop %v1540
    %1543 = vrot.lane.b32.xlu0 %v1541, 64
    %v1544 = vpop.permute.xlu0 %1543
    %v1546 = vmul.f32 %v1528, %v1544
    %1548 = vrot.lane.b32.xlu0 %v1546, 32
    %v1549 = vpop.permute.xlu0 %1548
    %v1551 = vrot.slane %v1546, 2
    %1552 = vrot.lane.b32.xlu0 %v1551, 64
    %v1553 = vpop.permute.xlu0 %1552
    %v1555 = vsel %vm196, %v1549, %v1553
    %v1556 = vld [vmem:[#allocation2 + $0x10] sm:$0x30]
    %v1557 = vld [vmem:[#allocation2 + $0x8] sm:$0xc]
    %v1558 = vpack.c.bf16 %v1555, %v1555
    %v1560 = vsel %vm241, %v1558, 0
    %1562 = vmatpush.bf16.msra.mxu0 0
    %1563 = vmatpush.bf16.msra.mxu0 0
    %1564 = vmatpush.bf16.msra.mxu0 0
    %1565 = vmatpush.bf16.msra.mxu0 0
    %1566 = vmatpush.bf16.msra.mxu0 %v1092
    %1567 = vmatpush.bf16.msra.mxu0 %v1090
    %1568 = vmatpush.bf16.msra.mxu0 %v1088
    %1569 = vmatpush.bf16.msra.mxu0 %v1086
    %1570 = vmatmul.bf16.gmra.mxu0 %v1560
    %v1571 = vpop.f32.mrf.mxu0
    %v1572 = vadd.f32 0.0, %v1571
    %v1573 = vpop.f32.mrf.mxu0
    %1574 = vdwg.mxu0
    %1575 = vmatpush.bf16.msra.mxu0 0
    %1576 = vmatpush.bf16.msra.mxu0 0
    %1577 = vmatpush.bf16.msra.mxu0 0
    %1578 = vmatpush.bf16.msra.mxu0 0
    %1579 = vmatpush.bf16.msra.mxu0 %v1093
    %1580 = vmatpush.bf16.msra.mxu0 %v1091
    %1581 = vmatpush.bf16.msra.mxu0 %v1089
    %1582 = vmatpush.bf16.msra.mxu0 %v1087
    %1583 = vmatmul.bf16.gmra.mxu0 %v1560
    %v1584 = vpop.f32.mrf.mxu0
    %v1585 = vadd.f32 0.0, %v1584
    %v1586 = vpop.f32.mrf.mxu0
    %1587 = vdwg.mxu0
    %v1589 = vrot.slane %v1572, 4
    %v1591 = vadd.f32 %v1556, %v1589
    %v1593 = vrot.slane %v1585, 6
    %v1595 = vadd.f32 %v1557, %v1593
    %v1597 = vrot.slane %v1591, 4
    %v1599 = vsel %vm155, %v1597, %v1595
    %v1600 = vxor.u32 %v1599, 2147483648
    %v1601 = vmul.f32 %v1600, 1.442695
    %v1602 = vpow.pop %v1601
    %v1603 = vadd.f32 %v1602, 1.0
    %v1604 = vrcp.pop %v1603
    %v1605 = vmul.f32 %v1603, %v1604
    %v1606 = vsub.f32 1.0, %v1605
    %v1607 = vmul.f32 %v1604, %v1606
    %v1608 = vadd.f32 %v1604, %v1607
    %vm1609 = vweird.f32 %v1603
    %vm1610 = vweird.f32 %v1604
    %vm1611 = vmor %vm1609, %vm1610
    %v1612 = vsel %vm1611, %v1604, %v1608
    %v1613 = vand.u32 2147483647, %v1603
    %vm1614 = vcmp.eq.f32.partialorder %v1613, 8.507059e+37
    %v1615 = vand.u32 %v1603, 2147483648
    %v1616 = vor.u32 1.1754944e-38, %v1615
    %v1617 = vsel %vm1614, %v1616, %v1612
    %v1618 = vmul.f32 1.0, %v1617
    %v1619 = vtanh.pop %v1599
    %v1620 = vmul.f32 %v1618, %v1540
    %1622 = vrot.lane.b32.xlu0 %v1619, 64
    %v1623 = vpop.permute.xlu0 %1622
    %v1625 = vmul.f32 %v1618, %v1623
    %1627 = vrot.lane.b32.xlu0 %v1625, 32
    %v1628 = vpop.permute.xlu0 %1627
    %v1630 = vadd.f32 %v1620, %v1628
    %v1631 = vtanh.pop %v1630
    %1633 = vrot.lane.b32.xlu0 %v1631, 64
    %v1634 = vpop.permute.xlu0 %1633
    %v1636 = vmul.f32 %v1618, %v1634
    %1638 = vrot.lane.b32.xlu0 %v1636, 32
    %v1639 = vpop.permute.xlu0 %1638
    %v1641 = vrot.slane %v1636, 2
    %1642 = vrot.lane.b32.xlu0 %v1641, 64
    %v1643 = vpop.permute.xlu0 %1642
    %v1645 = vsel %vm196, %v1639, %v1643
    %v1646 = vld [vmem:[#allocation2 + $0x10] sm:$0xc0]
    %v1647 = vld [vmem:[#allocation2 + $0x8] sm:$0x3]
    %v1648 = vpack.c.bf16 %v1645, %v1645
    %v1650 = vsel %vm241, %v1648, 0
    %1652 = vmatpush.bf16.msra.mxu0 0
    %1653 = vmatpush.bf16.msra.mxu0 0
    %1654 = vmatpush.bf16.msra.mxu0 0
    %1655 = vmatpush.bf16.msra.mxu0 0
    %1656 = vmatpush.bf16.msra.mxu0 %v1092
    %1657 = vmatpush.bf16.msra.mxu0 %v1090
    %1658 = vmatpush.bf16.msra.mxu0 %v1088
    %1659 = vmatpush.bf16.msra.mxu0 %v1086
    %1660 = vmatmul.bf16.gmra.mxu0 %v1650
    %v1661 = vpop.f32.mrf.mxu0
    %v1662 = vadd.f32 0.0, %v1661
    %v1663 = vpop.f32.mrf.mxu0
    %1664 = vdwg.mxu0
    %1665 = vmatpush.bf16.msra.mxu0 0
    %1666 = vmatpush.bf16.msra.mxu0 0
    %1667 = vmatpush.bf16.msra.mxu0 0
    %1668 = vmatpush.bf16.msra.mxu0 0
    %1669 = vmatpush.bf16.msra.mxu0 %v1093
    %1670 = vmatpush.bf16.msra.mxu0 %v1091
    %1671 = vmatpush.bf16.msra.mxu0 %v1089
    %1672 = vmatpush.bf16.msra.mxu0 %v1087
    %1673 = vmatmul.bf16.gmra.mxu0 %v1650
    %v1674 = vpop.f32.mrf.mxu0
    %v1675 = vadd.f32 0.0, %v1674
    %v1676 = vpop.f32.mrf.mxu0
    %1677 = vdwg.mxu0
    %v1679 = vrot.slane %v1662, 2
    %v1681 = vadd.f32 %v1646, %v1679
    %v1682 = vadd.f32 %v1647, %v1675
    %v1684 = vrot.slane %v1681, 6
    %v1687 = vrot.slane %v1682, 6
    %v1689 = vsel %vm155, %v1684, %v1687
    %v1690 = vxor.u32 %v1689, 2147483648
    %v1691 = vmul.f32 %v1690, 1.442695
    %v1692 = vpow.pop %v1691
    %v1693 = vadd.f32 %v1692, 1.0
    %v1694 = vrcp.pop %v1693
    %v1695 = vmul.f32 %v1693, %v1694
    %v1696 = vsub.f32 1.0, %v1695
    %v1697 = vmul.f32 %v1694, %v1696
    %v1698 = vadd.f32 %v1694, %v1697
    %vm1699 = vweird.f32 %v1693
    %vm1700 = vweird.f32 %v1694
    %vm1701 = vmor %vm1699, %vm1700
    %v1702 = vsel %vm1701, %v1694, %v1698
    %v1703 = vand.u32 2147483647, %v1693
    %vm1704 = vcmp.eq.f32.partialorder %v1703, 8.507059e+37
    %v1705 = vand.u32 %v1693, 2147483648
    %v1706 = vor.u32 1.1754944e-38, %v1705
    %v1707 = vsel %vm1704, %v1706, %v1702
    %v1708 = vmul.f32 1.0, %v1707
    %v1709 = vtanh.pop %v1689
    %v1710 = vmul.f32 %v1708, %v1630
    %1712 = vrot.lane.b32.xlu0 %v1709, 64
    %v1713 = vpop.permute.xlu0 %1712
    %v1715 = vmul.f32 %v1708, %v1713
    %1717 = vrot.lane.b32.xlu0 %v1715, 32
    %v1718 = vpop.permute.xlu0 %1717
    %v1720 = vadd.f32 %v1710, %v1718
    %v1721 = vtanh.pop %v1720
    %1723 = vrot.lane.b32.xlu0 %v1721, 64
    %v1724 = vpop.permute.xlu0 %1723
    %v1726 = vmul.f32 %v1708, %v1724
    %v1727 = vrot.slane %v1186, 6
    %v1729 = vrot.slane %v1276, 4
    %v1732 = vrot.slane %v1546, 6
    %v1734 = vrot.slane %v1636, 4
    %v1737 = vrot.slane %v1726, 2
    %v1739 = vsel %vm155, %v1049, %v1727
    %v1740 = vsel %vm880, %v1739, %v1729
    %v1741 = vsel %vm882, %v1740, %v1371
    %v1742 = vsel %vm155, %v1453, %v1732
    %v1743 = vsel %vm880, %v1742, %v1734
    %v1744 = vsel %vm882, %v1743, %v1737
    %v1745 = vrot.slane %v1453, 4
    %v1747 = vrot.slane %v1049, 4
    %v1749 = vsel %vm155, %v1737, %v1636
    %v1750 = vsel %vm880, %v1749, %v1732
    %v1751 = vsel %vm882, %v1750, %v1745
    %v1752 = vsel %vm155, %v1371, %v1276
    %v1753 = vsel %vm880, %v1752, %v1727
    %v1754 = vsel %vm882, %v1753, %v1747
    %1757 = vrot.lane.b32.xlu0 %v1741, 32
    %v1758 = vpop.permute.xlu0 %1757
    %1759 = vrot.lane.b32.xlu0 %v1744, 32
    %v1760 = vpop.permute.xlu0 %1759
    %1763 = vst.msk [vmem:[#allocation9] sm:$0xff] %vm196, %v1758
    %1764 = vst.msk [vmem:[#allocation9 + $0x8] sm:$0xff] %vm196, %v1760
    %1767 = vrot.lane.b32.xlu0 %v1751, 32
    %v1768 = vpop.permute.xlu0 %1767
    %1769 = vrot.lane.b32.xlu0 %v1754, 32
    %v1770 = vpop.permute.xlu0 %1769
    %1773 = vst.msk [vmem:[#allocation10] sm:$0xff] %vm196, %v1768
    %1774 = vst.msk [vmem:[#allocation10 + $0x8] sm:$0xff] %vm196, %v1770
    %1775 = vrot.lane.b32.xlu0 %v1726, 32
    %v1776 = vpop.permute.xlu0 %1775
    %vm1778 = vcmask 254976
    %1779 = vst.msk [vmem:[#allocation12] sm:$0x3] %vm1778, %v1776
    %vm1780 = vcmask 257026
    %1781 = vst.msk [vmem:[#allocation13 - $0x2] sm:$0xc] %vm1780, %v1776
    // Predicated region
    $region42: #{bilstm_forward.1} parent=1 // pred_check
      _
    $region43: #{bilstm_forward.1} parent=1 // pred_check_branch
      %1783 = sbr.rel (0) target = $region45
    $region44: #{bilstm_forward.1} parent=1 // pred_region
      %1785 = vsyncadd [#allocation5], 0
      %s1786 = sshll.u32 [#allocation9], 4
      %s1787 = int_to_ptr.vmem [resolvable:$true] %s1786
      %s1788 = sshll.u32 %s7, 4
      %s1789 = int_to_ptr.hbm [resolvable:$true] %s1788
      %1794 = dma.vmem_to_hbm [thread:$0]  %s1787, 256, %s1789, [#allocation5], 128, 128, 8
    $region45: #{bilstm_forward.1} parent=1 // pred_fallthru
      _
    // Predicated region
    $region46: #{bilstm_forward.1} parent=1 // pred_check
      _
    $region47: #{bilstm_forward.1} parent=1 // pred_check_branch
      %1796 = sbr.rel (0) target = $region49
    $region48: #{bilstm_forward.1} parent=1 // pred_region
      %1798 = vsyncadd [#allocation11], 0
      %s1799 = sshll.u32 [#allocation10], 4
      %s1800 = int_to_ptr.vmem [resolvable:$true] %s1799
      %s1801 = sshll.u32 %s8, 4
      %s1802 = int_to_ptr.hbm [resolvable:$true] %s1801
      %1807 = dma.vmem_to_hbm [thread:$0]  %s1800, 256, %s1802, [#allocation11], 128, 128, 8
    $region49: #{bilstm_forward.1} parent=1 // pred_fallthru
      _
    // Predicated region
    $region50: #{bilstm_forward.1} parent=1 // pred_check
      _
    $region51: #{bilstm_forward.1} parent=1 // pred_check_branch
      %1809 = sbr.rel (0) target = $region53
    $region52: #{bilstm_forward.1} parent=1 // pred_region
      %1811 = vsyncadd [#allocation11], 0
      %s1813 = sshll.u32 [#allocation12], 4
      %s1814 = int_to_ptr.vmem [resolvable:$true] %s1813
      %s1815 = sshll.u32 %s9, 4
      %s1816 = int_to_ptr.hbm [resolvable:$true] %s1815
      %1818 = dma.vmem_to_hbm [thread:$0]  %s1814, 32, %s1816, [#allocation11]
    $region53: #{bilstm_forward.1} parent=1 // pred_fallthru
      _
    // Predicated region
    $region54: #{bilstm_forward.1} parent=1 // pred_check
      _
    $region55: #{bilstm_forward.1} parent=1 // pred_check_branch
      %1820 = sbr.rel (0) target = $region57
    $region56: #{bilstm_forward.1} parent=1 // pred_region
      %1822 = vsyncadd [#allocation14], 0
      %s1824 = sshll.u32 [#allocation13], 4
      %s1825 = int_to_ptr.vmem [resolvable:$true] %s1824
      %s1826 = sshll.u32 %s10, 4
      %s1827 = int_to_ptr.hbm [resolvable:$true] %s1826
      %1829 = dma.vmem_to_hbm [thread:$0]  %s1825, 32, %s1827, [#allocation14]
    $region57: #{bilstm_forward.1} parent=1 // pred_fallthru
      _
    // Predicated region
    $region58: #{bilstm_forward.1} parent=1 // pred_check
      _
    $region59: #{bilstm_forward.1} parent=1 // pred_check_branch
      %1831 = sbr.rel (0) target = $region61
    $region60: #{bilstm_forward.1} parent=1 // pred_region
      %1833 = dma.done [#allocation5], 256
    $region61: #{bilstm_forward.1} parent=1 // pred_fallthru
      _
    // Predicated region
    $region62: #{bilstm_forward.1} parent=1 // pred_check
      _
    $region63: #{bilstm_forward.1} parent=1 // pred_check_branch
      %1835 = sbr.rel (0) target = $region65
    $region64: #{bilstm_forward.1} parent=1 // pred_region
      %1837 = dma.done [#allocation11], 256
    $region65: #{bilstm_forward.1} parent=1 // pred_fallthru
      _
    // Predicated region
    $region66: #{bilstm_forward.1} parent=1 // pred_check
      _
    $region67: #{bilstm_forward.1} parent=1 // pred_check_branch
      %1839 = sbr.rel (0) target = $region69
    $region68: #{bilstm_forward.1} parent=1 // pred_region
      %1841 = dma.done [#allocation11], 32
    $region69: #{bilstm_forward.1} parent=1 // pred_fallthru
      _
    // Predicated region
    $region70: #{bilstm_forward.1} parent=1 // pred_check
      _
    $region71: #{bilstm_forward.1} parent=1 // pred_check_branch
      %1843 = sbr.rel (0) target = $region73
    $region72: #{bilstm_forward.1} parent=1 // pred_region
      %1845 = dma.done [#allocation14], 32
    $region73: #{bilstm_forward.1} parent=1 // pred_fallthru
      _
    %1846 = vsyncpa [#allocation4], 1
    %1847 = vsyncpa [#allocation7], 1
    %1848 = vsyncpa [#allocation5], 1
    %1849 = vsyncpa [#allocation11], 1
    %1850 = vsyncpa [#allocation14], 1

</llo_original>
